<compile_context>
chip_gen: v7x
topology: tpu7x:2x2x1
jax: 0.10.0
libtpu: 0.0.40
codegen_flags: <defaults>
</compile_context>

<pallas_src>
import functools

import jax
import jax.numpy as jnp
import numpy as np
from jax.experimental import pallas as pl
from jax.experimental.pallas import tpu as pltpu

CONV_C = 16   # conv1 out_channels
HIDDEN = 32   # lstm hidden_size
KSIZE = 3     # conv kernel size


def cnn_lstm_kernel(xtaps_ref, cw_ref, cb_ref, wih_ref, whh_ref, lb_ref,
                    fcw_ref, fcb_ref, out_ref, *, batch, seq,
                    mm_dtype=jnp.bfloat16):
    B, S = batch, seq
    C = CONV_C
    H = HIDDEN

    # ---- Conv1d(1->16, k=3, pad=1) + ReLU as ONE lane-dense matmul ----------
    # xtaps is the time-major, zero-padded 3-tap view (S*B, 3) built in the
    # wrapper; cw is (3, C) tap-major.  No transpose / shift matrices needed.
    conv = jnp.dot(xtaps_ref[...].astype(mm_dtype), cw_ref[...].astype(mm_dtype),
                   preferred_element_type=jnp.float32) + cb_ref[...]
    conv = jnp.maximum(conv, 0.0)                        # (S*B, C) time-major

    # ---- Hoisted input projection: ONE (S*B, C) x (C, 4H) matmul + bias ----
    # Gate order is (i, f, o, g); i/f/o columns were pre-scaled by 0.5 so a
    # single tanh below realizes sigmoid exactly.  Kept as SSA (16 vregs), no
    # VMEM scratch round-trip.
    xproj = jnp.dot(conv.astype(mm_dtype), wih_ref[...].astype(mm_dtype),
                    preferred_element_type=jnp.float32) + lb_ref[...]   # (S*B, 4H)

    whh = whh_ref[...].astype(mm_dtype)                  # (H, 4H), i/f/o pre-halved

    # ---- LSTM recurrence: only h @ W_hh + one tanh sit on the serial path ---
    h = jnp.zeros((B, H), jnp.float32)
    c = jnp.zeros((B, H), jnp.float32)
    for t in range(S):                                   # S static -> fully unrolled
        gates = xproj[t * B:(t + 1) * B, :] + jnp.dot(
            h.astype(mm_dtype), whh, preferred_element_type=jnp.float32)
        tg = jnp.tanh(gates)                             # ONE EUP push for all 4 gates
        i_g = 0.5 * tg[:, 0:H] + 0.5                     # sigmoid via pre-halved cols
        f_g = 0.5 * tg[:, H:2 * H] + 0.5
        o_g = 0.5 * tg[:, 2 * H:3 * H] + 0.5
        g_g = tg[:, 3 * H:]
        c = f_g * c + i_g * g_g
        h = o_g * jnp.tanh(c)

    # ---- Final Linear(32 -> 1): VPU multiply + cross-lane reduce (no MXU) ---
    out_ref[...] = (jnp.sum(h * fcw_ref[...], axis=1, keepdims=True)
                    + fcb_ref[...])


def cnn_lstm_forward(x, p, *, recurrent_matmul_dtype=jnp.bfloat16):
    """x: (B, S) float32 -> (B, 1) float32.

    recurrent_matmul_dtype controls only the MXU operand dtype (bf16 default,
    single-pass MXU on all chips); accumulation and all elementwise/activation
    math stay f32.  Pass jnp.float32 for a bit-tight reference comparison.
    """
    B, S = x.shape
    # Time-major zero-padded 3-tap view (S*B, 3): pure layout plumbing done in
    # the wrapper so the kernel stays lane-dense with no in-kernel transpose.
    x_pad = jnp.pad(x, ((0, 0), (1, 1)))                       # (B, S+2)
    taps = jnp.stack([x_pad[:, 0:S],                           # x[t-1] (0 at t=0)
                      x_pad[:, 1:S + 1],                       # x[t]
                      x_pad[:, 2:S + 2]], axis=-1)             # x[t+1] (0 at t=S-1)
    taps = taps.transpose(1, 0, 2).reshape(S * B, KSIZE)       # (S*B, 3) time-major

    vmem = pl.BlockSpec(memory_space=pltpu.MemorySpace.VMEM)
    kernel = functools.partial(cnn_lstm_kernel, batch=B, seq=S,
                               mm_dtype=recurrent_matmul_dtype)
    return pl.pallas_call(
        kernel,
        out_shape=jax.ShapeDtypeStruct((B, 1), jnp.float32),
        in_specs=[vmem] * 8,
        out_specs=vmem,
    )(taps, p["conv_w"], p["conv_b"], p["w_ih"], p["w_hh"],
      p["lstm_b"], p["fc_w"], p["fc_b"])


def _reorder_and_scale_gates(w):
    """Gate blocks of the last (4H) dim: PyTorch (i,f,g,o) -> kernel (i,f,o,g),
    with the i/f/o blocks scaled by 0.5 so the kernel's single tanh implements
    sigmoid exactly (sigmoid(z) = 0.5*tanh(z/2) + 0.5)."""
    i, f, g, o = jnp.split(w, 4, axis=-1)
    return jnp.concatenate([0.5 * i, 0.5 * f, 0.5 * o, g], axis=-1)


def prepare_kernel_params(tp):
    """PyTorch-layout params -> kernel layout (transposed, gates reordered and
    i/f/o pre-halved, biases fused)."""
    return {
        "conv_w": tp["conv_w"][:, 0, :].T,                              # (3, 16) tap-major
        "conv_b": tp["conv_b"].reshape(1, CONV_C),                      # (1, 16)
        "w_ih": _reorder_and_scale_gates(tp["w_ih"].T),                 # (16, 128)
        "w_hh": _reorder_and_scale_gates(tp["w_hh"].T),                 # (32, 128)
        "lstm_b": _reorder_and_scale_gates(
            (tp["b_ih"] + tp["b_hh"]).reshape(1, 4 * HIDDEN)),          # (1, 128)
        "fc_w": tp["fc_w"].reshape(1, HIDDEN),                          # (1, 32)
        "fc_b": tp["fc_b"].reshape(1, 1),                               # (1, 1)
    }


def init_params(key):
    """PyTorch-default-style uniform init. Returns (torch_layout, kernel_layout)."""
    ks = jax.random.split(key, 8)
    kc = 1.0 / np.sqrt(1 * KSIZE)
    conv_w = jax.random.uniform(ks[0], (CONV_C, 1, KSIZE), jnp.float32, -kc, kc)
    conv_b = jax.random.uniform(ks[1], (CONV_C,), jnp.float32, -kc, kc)
    kl = 1.0 / np.sqrt(HIDDEN)
    w_ih = jax.random.uniform(ks[2], (4 * HIDDEN, CONV_C), jnp.float32, -kl, kl)
    w_hh = jax.random.uniform(ks[3], (4 * HIDDEN, HIDDEN), jnp.float32, -kl, kl)
    b_ih = jax.random.uniform(ks[4], (4 * HIDDEN,), jnp.float32, -kl, kl)
    b_hh = jax.random.uniform(ks[5], (4 * HIDDEN,), jnp.float32, -kl, kl)
    fc_w = jax.random.uniform(ks[6], (1, HIDDEN), jnp.float32, -kl, kl)
    fc_b = jax.random.uniform(ks[7], (1,), jnp.float32, -kl, kl)
    torch_params = dict(conv_w=conv_w, conv_b=conv_b, w_ih=w_ih, w_hh=w_hh,
                        b_ih=b_ih, b_hh=b_hh, fc_w=fc_w, fc_b=fc_b)
    return torch_params, prepare_kernel_params(torch_params)


def ref_forward(x, tp):
    """Pure-JAX reference matching PyTorch semantics (original i,f,g,o order)."""
    B, S = x.shape
    H = HIDDEN
    cw = tp["conv_w"][:, 0, :]                                    # (16, 3)
    xp = jnp.pad(x, ((0, 0), (1, 1)))
    conv = tp["conv_b"][None, None, :] + sum(
        xp[:, k:k + S][:, :, None] * cw[:, k][None, None, :] for k in range(KSIZE))
    conv = jnp.maximum(conv, 0.0)                                 # (B, S, 16)
    b = tp["b_ih"] + tp["b_hh"]
    h = jnp.zeros((B, H), jnp.float32)
    c = jnp.zeros((B, H), jnp.float32)
    for t in range(S):
        gates = conv[:, t, :] @ tp["w_ih"].T + h @ tp["w_hh"].T + b
        i = jax.nn.sigmoid(gates[:, 0:H])
        f = jax.nn.sigmoid(gates[:, H:2 * H])
        g = jnp.tanh(gates[:, 2 * H:3 * H])
        o = jax.nn.sigmoid(gates[:, 3 * H:4 * H])
        c = f * c + i * g
        h = o * jnp.tanh(c)
    return h @ tp["fc_w"].T + tp["fc_b"][None, :]


if __name__ == "__main__":
    key = jax.random.PRNGKey(0)
    kx, kp = jax.random.split(key)
    B, S = 8, 16                      # batch multiple of 8 -> full sublane occupancy
    x = jax.random.normal(kx, (B, S), jnp.float32)
    torch_params, kernel_params = init_params(kp)
    ref = ref_forward(x, torch_params)

    # f32 MXU-operand mode: tight check against the PyTorch-semantics reference.
    out_f32 = jax.block_until_ready(
        cnn_lstm_forward(x, kernel_params, recurrent_matmul_dtype=jnp.float32))
    assert out_f32.shape == (B, 1)
    np.testing.assert_allclose(np.asarray(out_f32), np.asarray(ref),
                               rtol=1e-3, atol=1e-4)

    # Default (bf16 MXU operands on all chips): looser tolerance, bf16 drift
    # compounds over the 16 serial steps.
    out = jax.block_until_ready(cnn_lstm_forward(x, kernel_params))
    assert out.shape == (B, 1)
    np.testing.assert_allclose(np.asarray(out), np.asarray(ref),
                               rtol=1e-1, atol=3e-2)

    print("KERNEL_OK")
</pallas_src>

<mosaic_0001>
module attributes {stable_mosaic.version = 11 : i64} {
  func.func @cnn_lstm_kernel(%arg0: memref<128x3xf32, #tpu.memory_space<vmem>>, %arg1: memref<3x16xf32, #tpu.memory_space<vmem>>, %arg2: memref<1x16xf32, #tpu.memory_space<vmem>>, %arg3: memref<16x128xf32, #tpu.memory_space<vmem>>, %arg4: memref<32x128xf32, #tpu.memory_space<vmem>>, %arg5: memref<1x128xf32, #tpu.memory_space<vmem>>, %arg6: memref<1x32xf32, #tpu.memory_space<vmem>>, %arg7: memref<1x1xf32, #tpu.memory_space<vmem>>, %arg8: memref<8x1xf32, #tpu.memory_space<vmem>>) attributes {dimension_semantics = [], scalar_prefetch = 0 : i64, scratch_operands = 0 : i64, tpu.core_type = #tpu.core_type<tc>} {
    %c0 = arith.constant 0 : index
    %c0_0 = arith.constant 0 : index
    %0 = vector.load %arg0[%c0, %c0_0] : memref<128x3xf32, #tpu.memory_space<vmem>>, vector<128x3xf32>
    %c0_1 = arith.constant 0 : index
    %c0_2 = arith.constant 0 : index
    %1 = vector.load %arg1[%c0_1, %c0_2] : memref<3x16xf32, #tpu.memory_space<vmem>>, vector<3x16xf32>
    %cst = arith.constant dense<0.000000e+00> : vector<128x16xf32>
    %2 = tpu.matmul %0, %1, %cst {dimension_numbers = #tpu.dot_dimension_numbers<[1], [0], [0], [1], [0, 0, 1, 1], [], []>} : vector<128x3xf32>, vector<3x16xf32>, vector<128x16xf32> -> vector<128x16xf32>
    %c0_3 = arith.constant 0 : index
    %c0_4 = arith.constant 0 : index
    %3 = vector.load %arg2[%c0_3, %c0_4] : memref<1x16xf32, #tpu.memory_space<vmem>>, vector<1x16xf32>
    %4 = vector.broadcast %3 : vector<1x16xf32> to vector<128x16xf32>
    %5 = arith.addf %2, %4 : vector<128x16xf32>
    %cst_5 = arith.constant 0.000000e+00 : f32
    %6 = vector.broadcast %cst_5 : f32 to vector<128x16xf32>
    %7 = arith.maximumf %5, %6 : vector<128x16xf32>
    %c0_6 = arith.constant 0 : index
    %c0_7 = arith.constant 0 : index
    %8 = vector.load %arg3[%c0_6, %c0_7] : memref<16x128xf32, #tpu.memory_space<vmem>>, vector<16x128xf32>
    %cst_8 = arith.constant dense<0.000000e+00> : vector<128x128xf32>
    %9 = tpu.matmul %7, %8, %cst_8 {dimension_numbers = #tpu.dot_dimension_numbers<[1], [0], [0], [1], [0, 0, 1, 1], [], []>} : vector<128x16xf32>, vector<16x128xf32>, vector<128x128xf32> -> vector<128x128xf32>
    %c0_9 = arith.constant 0 : index
    %c0_10 = arith.constant 0 : index
    %10 = vector.load %arg5[%c0_9, %c0_10] : memref<1x128xf32, #tpu.memory_space<vmem>>, vector<1x128xf32>
    %11 = vector.broadcast %10 : vector<1x128xf32> to vector<128x128xf32>
    %12 = arith.addf %9, %11 : vector<128x128xf32>
    %c0_11 = arith.constant 0 : index
    %c0_12 = arith.constant 0 : index
    %13 = vector.load %arg4[%c0_11, %c0_12] : memref<32x128xf32, #tpu.memory_space<vmem>>, vector<32x128xf32>
    %cst_13 = arith.constant 0.000000e+00 : f32
    %14 = vector.broadcast %cst_13 : f32 to vector<8x32xf32>
    %cst_14 = arith.constant 0.000000e+00 : f32
    %15 = vector.broadcast %cst_14 : f32 to vector<8x32xf32>
    %16 = vector.extract_strided_slice %12 {offsets = [0, 0], sizes = [8, 128], strides = [1, 1]} : vector<128x128xf32> to vector<8x128xf32>
    %cst_15 = arith.constant dense<0.000000e+00> : vector<8x128xf32>
    %17 = tpu.matmul %14, %13, %cst_15 {dimension_numbers = #tpu.dot_dimension_numbers<[1], [0], [0], [1], [0, 0, 1, 1], [], []>} : vector<8x32xf32>, vector<32x128xf32>, vector<8x128xf32> -> vector<8x128xf32>
    %18 = arith.addf %16, %17 : vector<8x128xf32>
    %19 = math.tanh %18 : vector<8x128xf32>
    %20 = vector.extract_strided_slice %19 {offsets = [0, 0], sizes = [8, 32], strides = [1, 1]} : vector<8x128xf32> to vector<8x32xf32>
    %cst_16 = arith.constant 5.000000e-01 : f32
    %21 = vector.broadcast %cst_16 : f32 to vector<8x32xf32>
    %22 = arith.mulf %21, %20 : vector<8x32xf32>
    %cst_17 = arith.constant 5.000000e-01 : f32
    %23 = vector.broadcast %cst_17 : f32 to vector<8x32xf32>
    %24 = arith.addf %22, %23 : vector<8x32xf32>
    %25 = vector.extract_strided_slice %19 {offsets = [0, 32], sizes = [8, 32], strides = [1, 1]} : vector<8x128xf32> to vector<8x32xf32>
    %cst_18 = arith.constant 5.000000e-01 : f32
    %26 = vector.broadcast %cst_18 : f32 to vector<8x32xf32>
    %27 = arith.mulf %26, %25 : vector<8x32xf32>
    %cst_19 = arith.constant 5.000000e-01 : f32
    %28 = vector.broadcast %cst_19 : f32 to vector<8x32xf32>
    %29 = arith.addf %27, %28 : vector<8x32xf32>
    %30 = vector.extract_strided_slice %19 {offsets = [0, 64], sizes = [8, 32], strides = [1, 1]} : vector<8x128xf32> to vector<8x32xf32>
    %cst_20 = arith.constant 5.000000e-01 : f32
    %31 = vector.broadcast %cst_20 : f32 to vector<8x32xf32>
    %32 = arith.mulf %31, %30 : vector<8x32xf32>
    %cst_21 = arith.constant 5.000000e-01 : f32
    %33 = vector.broadcast %cst_21 : f32 to vector<8x32xf32>
    %34 = arith.addf %32, %33 : vector<8x32xf32>
    %35 = vector.extract_strided_slice %19 {offsets = [0, 96], sizes = [8, 32], strides = [1, 1]} : vector<8x128xf32> to vector<8x32xf32>
    %36 = arith.mulf %29, %15 : vector<8x32xf32>
    %37 = arith.mulf %24, %35 : vector<8x32xf32>
    %38 = arith.addf %36, %37 : vector<8x32xf32>
    %39 = math.tanh %38 : vector<8x32xf32>
    %40 = arith.mulf %34, %39 : vector<8x32xf32>
    %41 = vector.extract_strided_slice %12 {offsets = [8, 0], sizes = [8, 128], strides = [1, 1]} : vector<128x128xf32> to vector<8x128xf32>
    %cst_22 = arith.constant dense<0.000000e+00> : vector<8x128xf32>
    %42 = tpu.matmul %40, %13, %cst_22 {dimension_numbers = #tpu.dot_dimension_numbers<[1], [0], [0], [1], [0, 0, 1, 1], [], []>} : vector<8x32xf32>, vector<32x128xf32>, vector<8x128xf32> -> vector<8x128xf32>
    %43 = arith.addf %41, %42 : vector<8x128xf32>
    %44 = math.tanh %43 : vector<8x128xf32>
    %45 = vector.extract_strided_slice %44 {offsets = [0, 0], sizes = [8, 32], strides = [1, 1]} : vector<8x128xf32> to vector<8x32xf32>
    %cst_23 = arith.constant 5.000000e-01 : f32
    %46 = vector.broadcast %cst_23 : f32 to vector<8x32xf32>
    %47 = arith.mulf %46, %45 : vector<8x32xf32>
    %cst_24 = arith.constant 5.000000e-01 : f32
    %48 = vector.broadcast %cst_24 : f32 to vector<8x32xf32>
    %49 = arith.addf %47, %48 : vector<8x32xf32>
    %50 = vector.extract_strided_slice %44 {offsets = [0, 32], sizes = [8, 32], strides = [1, 1]} : vector<8x128xf32> to vector<8x32xf32>
    %cst_25 = arith.constant 5.000000e-01 : f32
    %51 = vector.broadcast %cst_25 : f32 to vector<8x32xf32>
    %52 = arith.mulf %51, %50 : vector<8x32xf32>
    %cst_26 = arith.constant 5.000000e-01 : f32
    %53 = vector.broadcast %cst_26 : f32 to vector<8x32xf32>
    %54 = arith.addf %52, %53 : vector<8x32xf32>
    %55 = vector.extract_strided_slice %44 {offsets = [0, 64], sizes = [8, 32], strides = [1, 1]} : vector<8x128xf32> to vector<8x32xf32>
    %cst_27 = arith.constant 5.000000e-01 : f32
    %56 = vector.broadcast %cst_27 : f32 to vector<8x32xf32>
    %57 = arith.mulf %56, %55 : vector<8x32xf32>
    %cst_28 = arith.constant 5.000000e-01 : f32
    %58 = vector.broadcast %cst_28 : f32 to vector<8x32xf32>
    %59 = arith.addf %57, %58 : vector<8x32xf32>
    %60 = vector.extract_strided_slice %44 {offsets = [0, 96], sizes = [8, 32], strides = [1, 1]} : vector<8x128xf32> to vector<8x32xf32>
    %61 = arith.mulf %54, %38 : vector<8x32xf32>
    %62 = arith.mulf %49, %60 : vector<8x32xf32>
    %63 = arith.addf %61, %62 : vector<8x32xf32>
    %64 = math.tanh %63 : vector<8x32xf32>
    %65 = arith.mulf %59, %64 : vector<8x32xf32>
    %66 = vector.extract_strided_slice %12 {offsets = [16, 0], sizes = [8, 128], strides = [1, 1]} : vector<128x128xf32> to vector<8x128xf32>
    %cst_29 = arith.constant dense<0.000000e+00> : vector<8x128xf32>
    %67 = tpu.matmul %65, %13, %cst_29 {dimension_numbers = #tpu.dot_dimension_numbers<[1], [0], [0], [1], [0, 0, 1, 1], [], []>} : vector<8x32xf32>, vector<32x128xf32>, vector<8x128xf32> -> vector<8x128xf32>
    %68 = arith.addf %66, %67 : vector<8x128xf32>
    %69 = math.tanh %68 : vector<8x128xf32>
    %70 = vector.extract_strided_slice %69 {offsets = [0, 0], sizes = [8, 32], strides = [1, 1]} : vector<8x128xf32> to vector<8x32xf32>
    %cst_30 = arith.constant 5.000000e-01 : f32
    %71 = vector.broadcast %cst_30 : f32 to vector<8x32xf32>
    %72 = arith.mulf %71, %70 : vector<8x32xf32>
    %cst_31 = arith.constant 5.000000e-01 : f32
    %73 = vector.broadcast %cst_31 : f32 to vector<8x32xf32>
    %74 = arith.addf %72, %73 : vector<8x32xf32>
    %75 = vector.extract_strided_slice %69 {offsets = [0, 32], sizes = [8, 32], strides = [1, 1]} : vector<8x128xf32> to vector<8x32xf32>
    %cst_32 = arith.constant 5.000000e-01 : f32
    %76 = vector.broadcast %cst_32 : f32 to vector<8x32xf32>
    %77 = arith.mulf %76, %75 : vector<8x32xf32>
    %cst_33 = arith.constant 5.000000e-01 : f32
    %78 = vector.broadcast %cst_33 : f32 to vector<8x32xf32>
    %79 = arith.addf %77, %78 : vector<8x32xf32>
    %80 = vector.extract_strided_slice %69 {offsets = [0, 64], sizes = [8, 32], strides = [1, 1]} : vector<8x128xf32> to vector<8x32xf32>
    %cst_34 = arith.constant 5.000000e-01 : f32
    %81 = vector.broadcast %cst_34 : f32 to vector<8x32xf32>
    %82 = arith.mulf %81, %80 : vector<8x32xf32>
    %cst_35 = arith.constant 5.000000e-01 : f32
    %83 = vector.broadcast %cst_35 : f32 to vector<8x32xf32>
    %84 = arith.addf %82, %83 : vector<8x32xf32>
    %85 = vector.extract_strided_slice %69 {offsets = [0, 96], sizes = [8, 32], strides = [1, 1]} : vector<8x128xf32> to vector<8x32xf32>
    %86 = arith.mulf %79, %63 : vector<8x32xf32>
    %87 = arith.mulf %74, %85 : vector<8x32xf32>
    %88 = arith.addf %86, %87 : vector<8x32xf32>
    %89 = math.tanh %88 : vector<8x32xf32>
    %90 = arith.mulf %84, %89 : vector<8x32xf32>
    %91 = vector.extract_strided_slice %12 {offsets = [24, 0], sizes = [8, 128], strides = [1, 1]} : vector<128x128xf32> to vector<8x128xf32>
    %cst_36 = arith.constant dense<0.000000e+00> : vector<8x128xf32>
    %92 = tpu.matmul %90, %13, %cst_36 {dimension_numbers = #tpu.dot_dimension_numbers<[1], [0], [0], [1], [0, 0, 1, 1], [], []>} : vector<8x32xf32>, vector<32x128xf32>, vector<8x128xf32> -> vector<8x128xf32>
    %93 = arith.addf %91, %92 : vector<8x128xf32>
    %94 = math.tanh %93 : vector<8x128xf32>
    %95 = vector.extract_strided_slice %94 {offsets = [0, 0], sizes = [8, 32], strides = [1, 1]} : vector<8x128xf32> to vector<8x32xf32>
    %cst_37 = arith.constant 5.000000e-01 : f32
    %96 = vector.broadcast %cst_37 : f32 to vector<8x32xf32>
    %97 = arith.mulf %96, %95 : vector<8x32xf32>
    %cst_38 = arith.constant 5.000000e-01 : f32
    %98 = vector.broadcast %cst_38 : f32 to vector<8x32xf32>
    %99 = arith.addf %97, %98 : vector<8x32xf32>
    %100 = vector.extract_strided_slice %94 {offsets = [0, 32], sizes = [8, 32], strides = [1, 1]} : vector<8x128xf32> to vector<8x32xf32>
    %cst_39 = arith.constant 5.000000e-01 : f32
    %101 = vector.broadcast %cst_39 : f32 to vector<8x32xf32>
    %102 = arith.mulf %101, %100 : vector<8x32xf32>
    %cst_40 = arith.constant 5.000000e-01 : f32
    %103 = vector.broadcast %cst_40 : f32 to vector<8x32xf32>
    %104 = arith.addf %102, %103 : vector<8x32xf32>
    %105 = vector.extract_strided_slice %94 {offsets = [0, 64], sizes = [8, 32], strides = [1, 1]} : vector<8x128xf32> to vector<8x32xf32>
    %cst_41 = arith.constant 5.000000e-01 : f32
    %106 = vector.broadcast %cst_41 : f32 to vector<8x32xf32>
    %107 = arith.mulf %106, %105 : vector<8x32xf32>
    %cst_42 = arith.constant 5.000000e-01 : f32
    %108 = vector.broadcast %cst_42 : f32 to vector<8x32xf32>
    %109 = arith.addf %107, %108 : vector<8x32xf32>
    %110 = vector.extract_strided_slice %94 {offsets = [0, 96], sizes = [8, 32], strides = [1, 1]} : vector<8x128xf32> to vector<8x32xf32>
    %111 = arith.mulf %104, %88 : vector<8x32xf32>
    %112 = arith.mulf %99, %110 : vector<8x32xf32>
    %113 = arith.addf %111, %112 : vector<8x32xf32>
    %114 = math.tanh %113 : vector<8x32xf32>
    %115 = arith.mulf %109, %114 : vector<8x32xf32>
    %116 = vector.extract_strided_slice %12 {offsets = [32, 0], sizes = [8, 128], strides = [1, 1]} : vector<128x128xf32> to vector<8x128xf32>
    %cst_43 = arith.constant dense<0.000000e+00> : vector<8x128xf32>
    %117 = tpu.matmul %115, %13, %cst_43 {dimension_numbers = #tpu.dot_dimension_numbers<[1], [0], [0], [1], [0, 0, 1, 1], [], []>} : vector<8x32xf32>, vector<32x128xf32>, vector<8x128xf32> -> vector<8x128xf32>
    %118 = arith.addf %116, %117 : vector<8x128xf32>
    %119 = math.tanh %118 : vector<8x128xf32>
    %120 = vector.extract_strided_slice %119 {offsets = [0, 0], sizes = [8, 32], strides = [1, 1]} : vector<8x128xf32> to vector<8x32xf32>
    %cst_44 = arith.constant 5.000000e-01 : f32
    %121 = vector.broadcast %cst_44 : f32 to vector<8x32xf32>
    %122 = arith.mulf %121, %120 : vector<8x32xf32>
    %cst_45 = arith.constant 5.000000e-01 : f32
    %123 = vector.broadcast %cst_45 : f32 to vector<8x32xf32>
    %124 = arith.addf %122, %123 : vector<8x32xf32>
    %125 = vector.extract_strided_slice %119 {offsets = [0, 32], sizes = [8, 32], strides = [1, 1]} : vector<8x128xf32> to vector<8x32xf32>
    %cst_46 = arith.constant 5.000000e-01 : f32
    %126 = vector.broadcast %cst_46 : f32 to vector<8x32xf32>
    %127 = arith.mulf %126, %125 : vector<8x32xf32>
    %cst_47 = arith.constant 5.000000e-01 : f32
    %128 = vector.broadcast %cst_47 : f32 to vector<8x32xf32>
    %129 = arith.addf %127, %128 : vector<8x32xf32>
    %130 = vector.extract_strided_slice %119 {offsets = [0, 64], sizes = [8, 32], strides = [1, 1]} : vector<8x128xf32> to vector<8x32xf32>
    %cst_48 = arith.constant 5.000000e-01 : f32
    %131 = vector.broadcast %cst_48 : f32 to vector<8x32xf32>
    %132 = arith.mulf %131, %130 : vector<8x32xf32>
    %cst_49 = arith.constant 5.000000e-01 : f32
    %133 = vector.broadcast %cst_49 : f32 to vector<8x32xf32>
    %134 = arith.addf %132, %133 : vector<8x32xf32>
    %135 = vector.extract_strided_slice %119 {offsets = [0, 96], sizes = [8, 32], strides = [1, 1]} : vector<8x128xf32> to vector<8x32xf32>
    %136 = arith.mulf %129, %113 : vector<8x32xf32>
    %137 = arith.mulf %124, %135 : vector<8x32xf32>
    %138 = arith.addf %136, %137 : vector<8x32xf32>
    %139 = math.tanh %138 : vector<8x32xf32>
    %140 = arith.mulf %134, %139 : vector<8x32xf32>
    %141 = vector.extract_strided_slice %12 {offsets = [40, 0], sizes = [8, 128], strides = [1, 1]} : vector<128x128xf32> to vector<8x128xf32>
    %cst_50 = arith.constant dense<0.000000e+00> : vector<8x128xf32>
    %142 = tpu.matmul %140, %13, %cst_50 {dimension_numbers = #tpu.dot_dimension_numbers<[1], [0], [0], [1], [0, 0, 1, 1], [], []>} : vector<8x32xf32>, vector<32x128xf32>, vector<8x128xf32> -> vector<8x128xf32>
    %143 = arith.addf %141, %142 : vector<8x128xf32>
    %144 = math.tanh %143 : vector<8x128xf32>
    %145 = vector.extract_strided_slice %144 {offsets = [0, 0], sizes = [8, 32], strides = [1, 1]} : vector<8x128xf32> to vector<8x32xf32>
    %cst_51 = arith.constant 5.000000e-01 : f32
    %146 = vector.broadcast %cst_51 : f32 to vector<8x32xf32>
    %147 = arith.mulf %146, %145 : vector<8x32xf32>
    %cst_52 = arith.constant 5.000000e-01 : f32
    %148 = vector.broadcast %cst_52 : f32 to vector<8x32xf32>
    %149 = arith.addf %147, %148 : vector<8x32xf32>
    %150 = vector.extract_strided_slice %144 {offsets = [0, 32], sizes = [8, 32], strides = [1, 1]} : vector<8x128xf32> to vector<8x32xf32>
    %cst_53 = arith.constant 5.000000e-01 : f32
    %151 = vector.broadcast %cst_53 : f32 to vector<8x32xf32>
    %152 = arith.mulf %151, %150 : vector<8x32xf32>
    %cst_54 = arith.constant 5.000000e-01 : f32
    %153 = vector.broadcast %cst_54 : f32 to vector<8x32xf32>
    %154 = arith.addf %152, %153 : vector<8x32xf32>
    %155 = vector.extract_strided_slice %144 {offsets = [0, 64], sizes = [8, 32], strides = [1, 1]} : vector<8x128xf32> to vector<8x32xf32>
    %cst_55 = arith.constant 5.000000e-01 : f32
    %156 = vector.broadcast %cst_55 : f32 to vector<8x32xf32>
    %157 = arith.mulf %156, %155 : vector<8x32xf32>
    %cst_56 = arith.constant 5.000000e-01 : f32
    %158 = vector.broadcast %cst_56 : f32 to vector<8x32xf32>
    %159 = arith.addf %157, %158 : vector<8x32xf32>
    %160 = vector.extract_strided_slice %144 {offsets = [0, 96], sizes = [8, 32], strides = [1, 1]} : vector<8x128xf32> to vector<8x32xf32>
    %161 = arith.mulf %154, %138 : vector<8x32xf32>
    %162 = arith.mulf %149, %160 : vector<8x32xf32>
    %163 = arith.addf %161, %162 : vector<8x32xf32>
    %164 = math.tanh %163 : vector<8x32xf32>
    %165 = arith.mulf %159, %164 : vector<8x32xf32>
    %166 = vector.extract_strided_slice %12 {offsets = [48, 0], sizes = [8, 128], strides = [1, 1]} : vector<128x128xf32> to vector<8x128xf32>
    %cst_57 = arith.constant dense<0.000000e+00> : vector<8x128xf32>
    %167 = tpu.matmul %165, %13, %cst_57 {dimension_numbers = #tpu.dot_dimension_numbers<[1], [0], [0], [1], [0, 0, 1, 1], [], []>} : vector<8x32xf32>, vector<32x128xf32>, vector<8x128xf32> -> vector<8x128xf32>
    %168 = arith.addf %166, %167 : vector<8x128xf32>
    %169 = math.tanh %168 : vector<8x128xf32>
    %170 = vector.extract_strided_slice %169 {offsets = [0, 0], sizes = [8, 32], strides = [1, 1]} : vector<8x128xf32> to vector<8x32xf32>
    %cst_58 = arith.constant 5.000000e-01 : f32
    %171 = vector.broadcast %cst_58 : f32 to vector<8x32xf32>
    %172 = arith.mulf %171, %170 : vector<8x32xf32>
    %cst_59 = arith.constant 5.000000e-01 : f32
    %173 = vector.broadcast %cst_59 : f32 to vector<8x32xf32>
    %174 = arith.addf %172, %173 : vector<8x32xf32>
    %175 = vector.extract_strided_slice %169 {offsets = [0, 32], sizes = [8, 32], strides = [1, 1]} : vector<8x128xf32> to vector<8x32xf32>
    %cst_60 = arith.constant 5.000000e-01 : f32
    %176 = vector.broadcast %cst_60 : f32 to vector<8x32xf32>
    %177 = arith.mulf %176, %175 : vector<8x32xf32>
    %cst_61 = arith.constant 5.000000e-01 : f32
    %178 = vector.broadcast %cst_61 : f32 to vector<8x32xf32>
    %179 = arith.addf %177, %178 : vector<8x32xf32>
    %180 = vector.extract_strided_slice %169 {offsets = [0, 64], sizes = [8, 32], strides = [1, 1]} : vector<8x128xf32> to vector<8x32xf32>
    %cst_62 = arith.constant 5.000000e-01 : f32
    %181 = vector.broadcast %cst_62 : f32 to vector<8x32xf32>
    %182 = arith.mulf %181, %180 : vector<8x32xf32>
    %cst_63 = arith.constant 5.000000e-01 : f32
    %183 = vector.broadcast %cst_63 : f32 to vector<8x32xf32>
    %184 = arith.addf %182, %183 : vector<8x32xf32>
    %185 = vector.extract_strided_slice %169 {offsets = [0, 96], sizes = [8, 32], strides = [1, 1]} : vector<8x128xf32> to vector<8x32xf32>
    %186 = arith.mulf %179, %163 : vector<8x32xf32>
    %187 = arith.mulf %174, %185 : vector<8x32xf32>
    %188 = arith.addf %186, %187 : vector<8x32xf32>
    %189 = math.tanh %188 : vector<8x32xf32>
    %190 = arith.mulf %184, %189 : vector<8x32xf32>
    %191 = vector.extract_strided_slice %12 {offsets = [56, 0], sizes = [8, 128], strides = [1, 1]} : vector<128x128xf32> to vector<8x128xf32>
    %cst_64 = arith.constant dense<0.000000e+00> : vector<8x128xf32>
    %192 = tpu.matmul %190, %13, %cst_64 {dimension_numbers = #tpu.dot_dimension_numbers<[1], [0], [0], [1], [0, 0, 1, 1], [], []>} : vector<8x32xf32>, vector<32x128xf32>, vector<8x128xf32> -> vector<8x128xf32>
    %193 = arith.addf %191, %192 : vector<8x128xf32>
    %194 = math.tanh %193 : vector<8x128xf32>
    %195 = vector.extract_strided_slice %194 {offsets = [0, 0], sizes = [8, 32], strides = [1, 1]} : vector<8x128xf32> to vector<8x32xf32>
    %cst_65 = arith.constant 5.000000e-01 : f32
    %196 = vector.broadcast %cst_65 : f32 to vector<8x32xf32>
    %197 = arith.mulf %196, %195 : vector<8x32xf32>
    %cst_66 = arith.constant 5.000000e-01 : f32
    %198 = vector.broadcast %cst_66 : f32 to vector<8x32xf32>
    %199 = arith.addf %197, %198 : vector<8x32xf32>
    %200 = vector.extract_strided_slice %194 {offsets = [0, 32], sizes = [8, 32], strides = [1, 1]} : vector<8x128xf32> to vector<8x32xf32>
    %cst_67 = arith.constant 5.000000e-01 : f32
    %201 = vector.broadcast %cst_67 : f32 to vector<8x32xf32>
    %202 = arith.mulf %201, %200 : vector<8x32xf32>
    %cst_68 = arith.constant 5.000000e-01 : f32
    %203 = vector.broadcast %cst_68 : f32 to vector<8x32xf32>
    %204 = arith.addf %202, %203 : vector<8x32xf32>
    %205 = vector.extract_strided_slice %194 {offsets = [0, 64], sizes = [8, 32], strides = [1, 1]} : vector<8x128xf32> to vector<8x32xf32>
    %cst_69 = arith.constant 5.000000e-01 : f32
    %206 = vector.broadcast %cst_69 : f32 to vector<8x32xf32>
    %207 = arith.mulf %206, %205 : vector<8x32xf32>
    %cst_70 = arith.constant 5.000000e-01 : f32
    %208 = vector.broadcast %cst_70 : f32 to vector<8x32xf32>
    %209 = arith.addf %207, %208 : vector<8x32xf32>
    %210 = vector.extract_strided_slice %194 {offsets = [0, 96], sizes = [8, 32], strides = [1, 1]} : vector<8x128xf32> to vector<8x32xf32>
    %211 = arith.mulf %204, %188 : vector<8x32xf32>
    %212 = arith.mulf %199, %210 : vector<8x32xf32>
    %213 = arith.addf %211, %212 : vector<8x32xf32>
    %214 = math.tanh %213 : vector<8x32xf32>
    %215 = arith.mulf %209, %214 : vector<8x32xf32>
    %216 = vector.extract_strided_slice %12 {offsets = [64, 0], sizes = [8, 128], strides = [1, 1]} : vector<128x128xf32> to vector<8x128xf32>
    %cst_71 = arith.constant dense<0.000000e+00> : vector<8x128xf32>
    %217 = tpu.matmul %215, %13, %cst_71 {dimension_numbers = #tpu.dot_dimension_numbers<[1], [0], [0], [1], [0, 0, 1, 1], [], []>} : vector<8x32xf32>, vector<32x128xf32>, vector<8x128xf32> -> vector<8x128xf32>
    %218 = arith.addf %216, %217 : vector<8x128xf32>
    %219 = math.tanh %218 : vector<8x128xf32>
    %220 = vector.extract_strided_slice %219 {offsets = [0, 0], sizes = [8, 32], strides = [1, 1]} : vector<8x128xf32> to vector<8x32xf32>
    %cst_72 = arith.constant 5.000000e-01 : f32
    %221 = vector.broadcast %cst_72 : f32 to vector<8x32xf32>
    %222 = arith.mulf %221, %220 : vector<8x32xf32>
    %cst_73 = arith.constant 5.000000e-01 : f32
    %223 = vector.broadcast %cst_73 : f32 to vector<8x32xf32>
    %224 = arith.addf %222, %223 : vector<8x32xf32>
    %225 = vector.extract_strided_slice %219 {offsets = [0, 32], sizes = [8, 32], strides = [1, 1]} : vector<8x128xf32> to vector<8x32xf32>
    %cst_74 = arith.constant 5.000000e-01 : f32
    %226 = vector.broadcast %cst_74 : f32 to vector<8x32xf32>
    %227 = arith.mulf %226, %225 : vector<8x32xf32>
    %cst_75 = arith.constant 5.000000e-01 : f32
    %228 = vector.broadcast %cst_75 : f32 to vector<8x32xf32>
    %229 = arith.addf %227, %228 : vector<8x32xf32>
    %230 = vector.extract_strided_slice %219 {offsets = [0, 64], sizes = [8, 32], strides = [1, 1]} : vector<8x128xf32> to vector<8x32xf32>
    %cst_76 = arith.constant 5.000000e-01 : f32
    %231 = vector.broadcast %cst_76 : f32 to vector<8x32xf32>
    %232 = arith.mulf %231, %230 : vector<8x32xf32>
    %cst_77 = arith.constant 5.000000e-01 : f32
    %233 = vector.broadcast %cst_77 : f32 to vector<8x32xf32>
    %234 = arith.addf %232, %233 : vector<8x32xf32>
    %235 = vector.extract_strided_slice %219 {offsets = [0, 96], sizes = [8, 32], strides = [1, 1]} : vector<8x128xf32> to vector<8x32xf32>
    %236 = arith.mulf %229, %213 : vector<8x32xf32>
    %237 = arith.mulf %224, %235 : vector<8x32xf32>
    %238 = arith.addf %236, %237 : vector<8x32xf32>
    %239 = math.tanh %238 : vector<8x32xf32>
    %240 = arith.mulf %234, %239 : vector<8x32xf32>
    %241 = vector.extract_strided_slice %12 {offsets = [72, 0], sizes = [8, 128], strides = [1, 1]} : vector<128x128xf32> to vector<8x128xf32>
    %cst_78 = arith.constant dense<0.000000e+00> : vector<8x128xf32>
    %242 = tpu.matmul %240, %13, %cst_78 {dimension_numbers = #tpu.dot_dimension_numbers<[1], [0], [0], [1], [0, 0, 1, 1], [], []>} : vector<8x32xf32>, vector<32x128xf32>, vector<8x128xf32> -> vector<8x128xf32>
    %243 = arith.addf %241, %242 : vector<8x128xf32>
    %244 = math.tanh %243 : vector<8x128xf32>
    %245 = vector.extract_strided_slice %244 {offsets = [0, 0], sizes = [8, 32], strides = [1, 1]} : vector<8x128xf32> to vector<8x32xf32>
    %cst_79 = arith.constant 5.000000e-01 : f32
    %246 = vector.broadcast %cst_79 : f32 to vector<8x32xf32>
    %247 = arith.mulf %246, %245 : vector<8x32xf32>
    %cst_80 = arith.constant 5.000000e-01 : f32
    %248 = vector.broadcast %cst_80 : f32 to vector<8x32xf32>
    %249 = arith.addf %247, %248 : vector<8x32xf32>
    %250 = vector.extract_strided_slice %244 {offsets = [0, 32], sizes = [8, 32], strides = [1, 1]} : vector<8x128xf32> to vector<8x32xf32>
    %cst_81 = arith.constant 5.000000e-01 : f32
    %251 = vector.broadcast %cst_81 : f32 to vector<8x32xf32>
    %252 = arith.mulf %251, %250 : vector<8x32xf32>
    %cst_82 = arith.constant 5.000000e-01 : f32
    %253 = vector.broadcast %cst_82 : f32 to vector<8x32xf32>
    %254 = arith.addf %252, %253 : vector<8x32xf32>
    %255 = vector.extract_strided_slice %244 {offsets = [0, 64], sizes = [8, 32], strides = [1, 1]} : vector<8x128xf32> to vector<8x32xf32>
    %cst_83 = arith.constant 5.000000e-01 : f32
    %256 = vector.broadcast %cst_83 : f32 to vector<8x32xf32>
    %257 = arith.mulf %256, %255 : vector<8x32xf32>
    %cst_84 = arith.constant 5.000000e-01 : f32
    %258 = vector.broadcast %cst_84 : f32 to vector<8x32xf32>
    %259 = arith.addf %257, %258 : vector<8x32xf32>
    %260 = vector.extract_strided_slice %244 {offsets = [0, 96], sizes = [8, 32], strides = [1, 1]} : vector<8x128xf32> to vector<8x32xf32>
    %261 = arith.mulf %254, %238 : vector<8x32xf32>
    %262 = arith.mulf %249, %260 : vector<8x32xf32>
    %263 = arith.addf %261, %262 : vector<8x32xf32>
    %264 = math.tanh %263 : vector<8x32xf32>
    %265 = arith.mulf %259, %264 : vector<8x32xf32>
    %266 = vector.extract_strided_slice %12 {offsets = [80, 0], sizes = [8, 128], strides = [1, 1]} : vector<128x128xf32> to vector<8x128xf32>
    %cst_85 = arith.constant dense<0.000000e+00> : vector<8x128xf32>
    %267 = tpu.matmul %265, %13, %cst_85 {dimension_numbers = #tpu.dot_dimension_numbers<[1], [0], [0], [1], [0, 0, 1, 1], [], []>} : vector<8x32xf32>, vector<32x128xf32>, vector<8x128xf32> -> vector<8x128xf32>
    %268 = arith.addf %266, %267 : vector<8x128xf32>
    %269 = math.tanh %268 : vector<8x128xf32>
    %270 = vector.extract_strided_slice %269 {offsets = [0, 0], sizes = [8, 32], strides = [1, 1]} : vector<8x128xf32> to vector<8x32xf32>
    %cst_86 = arith.constant 5.000000e-01 : f32
    %271 = vector.broadcast %cst_86 : f32 to vector<8x32xf32>
    %272 = arith.mulf %271, %270 : vector<8x32xf32>
    %cst_87 = arith.constant 5.000000e-01 : f32
    %273 = vector.broadcast %cst_87 : f32 to vector<8x32xf32>
    %274 = arith.addf %272, %273 : vector<8x32xf32>
    %275 = vector.extract_strided_slice %269 {offsets = [0, 32], sizes = [8, 32], strides = [1, 1]} : vector<8x128xf32> to vector<8x32xf32>
    %cst_88 = arith.constant 5.000000e-01 : f32
    %276 = vector.broadcast %cst_88 : f32 to vector<8x32xf32>
    %277 = arith.mulf %276, %275 : vector<8x32xf32>
    %cst_89 = arith.constant 5.000000e-01 : f32
    %278 = vector.broadcast %cst_89 : f32 to vector<8x32xf32>
    %279 = arith.addf %277, %278 : vector<8x32xf32>
    %280 = vector.extract_strided_slice %269 {offsets = [0, 64], sizes = [8, 32], strides = [1, 1]} : vector<8x128xf32> to vector<8x32xf32>
    %cst_90 = arith.constant 5.000000e-01 : f32
    %281 = vector.broadcast %cst_90 : f32 to vector<8x32xf32>
    %282 = arith.mulf %281, %280 : vector<8x32xf32>
    %cst_91 = arith.constant 5.000000e-01 : f32
    %283 = vector.broadcast %cst_91 : f32 to vector<8x32xf32>
    %284 = arith.addf %282, %283 : vector<8x32xf32>
    %285 = vector.extract_strided_slice %269 {offsets = [0, 96], sizes = [8, 32], strides = [1, 1]} : vector<8x128xf32> to vector<8x32xf32>
    %286 = arith.mulf %279, %263 : vector<8x32xf32>
    %287 = arith.mulf %274, %285 : vector<8x32xf32>
    %288 = arith.addf %286, %287 : vector<8x32xf32>
    %289 = math.tanh %288 : vector<8x32xf32>
    %290 = arith.mulf %284, %289 : vector<8x32xf32>
    %291 = vector.extract_strided_slice %12 {offsets = [88, 0], sizes = [8, 128], strides = [1, 1]} : vector<128x128xf32> to vector<8x128xf32>
    %cst_92 = arith.constant dense<0.000000e+00> : vector<8x128xf32>
    %292 = tpu.matmul %290, %13, %cst_92 {dimension_numbers = #tpu.dot_dimension_numbers<[1], [0], [0], [1], [0, 0, 1, 1], [], []>} : vector<8x32xf32>, vector<32x128xf32>, vector<8x128xf32> -> vector<8x128xf32>
    %293 = arith.addf %291, %292 : vector<8x128xf32>
    %294 = math.tanh %293 : vector<8x128xf32>
    %295 = vector.extract_strided_slice %294 {offsets = [0, 0], sizes = [8, 32], strides = [1, 1]} : vector<8x128xf32> to vector<8x32xf32>
    %cst_93 = arith.constant 5.000000e-01 : f32
    %296 = vector.broadcast %cst_93 : f32 to vector<8x32xf32>
    %297 = arith.mulf %296, %295 : vector<8x32xf32>
    %cst_94 = arith.constant 5.000000e-01 : f32
    %298 = vector.broadcast %cst_94 : f32 to vector<8x32xf32>
    %299 = arith.addf %297, %298 : vector<8x32xf32>
    %300 = vector.extract_strided_slice %294 {offsets = [0, 32], sizes = [8, 32], strides = [1, 1]} : vector<8x128xf32> to vector<8x32xf32>
    %cst_95 = arith.constant 5.000000e-01 : f32
    %301 = vector.broadcast %cst_95 : f32 to vector<8x32xf32>
    %302 = arith.mulf %301, %300 : vector<8x32xf32>
    %cst_96 = arith.constant 5.000000e-01 : f32
    %303 = vector.broadcast %cst_96 : f32 to vector<8x32xf32>
    %304 = arith.addf %302, %303 : vector<8x32xf32>
    %305 = vector.extract_strided_slice %294 {offsets = [0, 64], sizes = [8, 32], strides = [1, 1]} : vector<8x128xf32> to vector<8x32xf32>
    %cst_97 = arith.constant 5.000000e-01 : f32
    %306 = vector.broadcast %cst_97 : f32 to vector<8x32xf32>
    %307 = arith.mulf %306, %305 : vector<8x32xf32>
    %cst_98 = arith.constant 5.000000e-01 : f32
    %308 = vector.broadcast %cst_98 : f32 to vector<8x32xf32>
    %309 = arith.addf %307, %308 : vector<8x32xf32>
    %310 = vector.extract_strided_slice %294 {offsets = [0, 96], sizes = [8, 32], strides = [1, 1]} : vector<8x128xf32> to vector<8x32xf32>
    %311 = arith.mulf %304, %288 : vector<8x32xf32>
    %312 = arith.mulf %299, %310 : vector<8x32xf32>
    %313 = arith.addf %311, %312 : vector<8x32xf32>
    %314 = math.tanh %313 : vector<8x32xf32>
    %315 = arith.mulf %309, %314 : vector<8x32xf32>
    %316 = vector.extract_strided_slice %12 {offsets = [96, 0], sizes = [8, 128], strides = [1, 1]} : vector<128x128xf32> to vector<8x128xf32>
    %cst_99 = arith.constant dense<0.000000e+00> : vector<8x128xf32>
    %317 = tpu.matmul %315, %13, %cst_99 {dimension_numbers = #tpu.dot_dimension_numbers<[1], [0], [0], [1], [0, 0, 1, 1], [], []>} : vector<8x32xf32>, vector<32x128xf32>, vector<8x128xf32> -> vector<8x128xf32>
    %318 = arith.addf %316, %317 : vector<8x128xf32>
    %319 = math.tanh %318 : vector<8x128xf32>
    %320 = vector.extract_strided_slice %319 {offsets = [0, 0], sizes = [8, 32], strides = [1, 1]} : vector<8x128xf32> to vector<8x32xf32>
    %cst_100 = arith.constant 5.000000e-01 : f32
    %321 = vector.broadcast %cst_100 : f32 to vector<8x32xf32>
    %322 = arith.mulf %321, %320 : vector<8x32xf32>
    %cst_101 = arith.constant 5.000000e-01 : f32
    %323 = vector.broadcast %cst_101 : f32 to vector<8x32xf32>
    %324 = arith.addf %322, %323 : vector<8x32xf32>
    %325 = vector.extract_strided_slice %319 {offsets = [0, 32], sizes = [8, 32], strides = [1, 1]} : vector<8x128xf32> to vector<8x32xf32>
    %cst_102 = arith.constant 5.000000e-01 : f32
    %326 = vector.broadcast %cst_102 : f32 to vector<8x32xf32>
    %327 = arith.mulf %326, %325 : vector<8x32xf32>
    %cst_103 = arith.constant 5.000000e-01 : f32
    %328 = vector.broadcast %cst_103 : f32 to vector<8x32xf32>
    %329 = arith.addf %327, %328 : vector<8x32xf32>
    %330 = vector.extract_strided_slice %319 {offsets = [0, 64], sizes = [8, 32], strides = [1, 1]} : vector<8x128xf32> to vector<8x32xf32>
    %cst_104 = arith.constant 5.000000e-01 : f32
    %331 = vector.broadcast %cst_104 : f32 to vector<8x32xf32>
    %332 = arith.mulf %331, %330 : vector<8x32xf32>
    %cst_105 = arith.constant 5.000000e-01 : f32
    %333 = vector.broadcast %cst_105 : f32 to vector<8x32xf32>
    %334 = arith.addf %332, %333 : vector<8x32xf32>
    %335 = vector.extract_strided_slice %319 {offsets = [0, 96], sizes = [8, 32], strides = [1, 1]} : vector<8x128xf32> to vector<8x32xf32>
    %336 = arith.mulf %329, %313 : vector<8x32xf32>
    %337 = arith.mulf %324, %335 : vector<8x32xf32>
    %338 = arith.addf %336, %337 : vector<8x32xf32>
    %339 = math.tanh %338 : vector<8x32xf32>
    %340 = arith.mulf %334, %339 : vector<8x32xf32>
    %341 = vector.extract_strided_slice %12 {offsets = [104, 0], sizes = [8, 128], strides = [1, 1]} : vector<128x128xf32> to vector<8x128xf32>
    %cst_106 = arith.constant dense<0.000000e+00> : vector<8x128xf32>
    %342 = tpu.matmul %340, %13, %cst_106 {dimension_numbers = #tpu.dot_dimension_numbers<[1], [0], [0], [1], [0, 0, 1, 1], [], []>} : vector<8x32xf32>, vector<32x128xf32>, vector<8x128xf32> -> vector<8x128xf32>
    %343 = arith.addf %341, %342 : vector<8x128xf32>
    %344 = math.tanh %343 : vector<8x128xf32>
    %345 = vector.extract_strided_slice %344 {offsets = [0, 0], sizes = [8, 32], strides = [1, 1]} : vector<8x128xf32> to vector<8x32xf32>
    %cst_107 = arith.constant 5.000000e-01 : f32
    %346 = vector.broadcast %cst_107 : f32 to vector<8x32xf32>
    %347 = arith.mulf %346, %345 : vector<8x32xf32>
    %cst_108 = arith.constant 5.000000e-01 : f32
    %348 = vector.broadcast %cst_108 : f32 to vector<8x32xf32>
    %349 = arith.addf %347, %348 : vector<8x32xf32>
    %350 = vector.extract_strided_slice %344 {offsets = [0, 32], sizes = [8, 32], strides = [1, 1]} : vector<8x128xf32> to vector<8x32xf32>
    %cst_109 = arith.constant 5.000000e-01 : f32
    %351 = vector.broadcast %cst_109 : f32 to vector<8x32xf32>
    %352 = arith.mulf %351, %350 : vector<8x32xf32>
    %cst_110 = arith.constant 5.000000e-01 : f32
    %353 = vector.broadcast %cst_110 : f32 to vector<8x32xf32>
    %354 = arith.addf %352, %353 : vector<8x32xf32>
    %355 = vector.extract_strided_slice %344 {offsets = [0, 64], sizes = [8, 32], strides = [1, 1]} : vector<8x128xf32> to vector<8x32xf32>
    %cst_111 = arith.constant 5.000000e-01 : f32
    %356 = vector.broadcast %cst_111 : f32 to vector<8x32xf32>
    %357 = arith.mulf %356, %355 : vector<8x32xf32>
    %cst_112 = arith.constant 5.000000e-01 : f32
    %358 = vector.broadcast %cst_112 : f32 to vector<8x32xf32>
    %359 = arith.addf %357, %358 : vector<8x32xf32>
    %360 = vector.extract_strided_slice %344 {offsets = [0, 96], sizes = [8, 32], strides = [1, 1]} : vector<8x128xf32> to vector<8x32xf32>
    %361 = arith.mulf %354, %338 : vector<8x32xf32>
    %362 = arith.mulf %349, %360 : vector<8x32xf32>
    %363 = arith.addf %361, %362 : vector<8x32xf32>
    %364 = math.tanh %363 : vector<8x32xf32>
    %365 = arith.mulf %359, %364 : vector<8x32xf32>
    %366 = vector.extract_strided_slice %12 {offsets = [112, 0], sizes = [8, 128], strides = [1, 1]} : vector<128x128xf32> to vector<8x128xf32>
    %cst_113 = arith.constant dense<0.000000e+00> : vector<8x128xf32>
    %367 = tpu.matmul %365, %13, %cst_113 {dimension_numbers = #tpu.dot_dimension_numbers<[1], [0], [0], [1], [0, 0, 1, 1], [], []>} : vector<8x32xf32>, vector<32x128xf32>, vector<8x128xf32> -> vector<8x128xf32>
    %368 = arith.addf %366, %367 : vector<8x128xf32>
    %369 = math.tanh %368 : vector<8x128xf32>
    %370 = vector.extract_strided_slice %369 {offsets = [0, 0], sizes = [8, 32], strides = [1, 1]} : vector<8x128xf32> to vector<8x32xf32>
    %cst_114 = arith.constant 5.000000e-01 : f32
    %371 = vector.broadcast %cst_114 : f32 to vector<8x32xf32>
    %372 = arith.mulf %371, %370 : vector<8x32xf32>
    %cst_115 = arith.constant 5.000000e-01 : f32
    %373 = vector.broadcast %cst_115 : f32 to vector<8x32xf32>
    %374 = arith.addf %372, %373 : vector<8x32xf32>
    %375 = vector.extract_strided_slice %369 {offsets = [0, 32], sizes = [8, 32], strides = [1, 1]} : vector<8x128xf32> to vector<8x32xf32>
    %cst_116 = arith.constant 5.000000e-01 : f32
    %376 = vector.broadcast %cst_116 : f32 to vector<8x32xf32>
    %377 = arith.mulf %376, %375 : vector<8x32xf32>
    %cst_117 = arith.constant 5.000000e-01 : f32
    %378 = vector.broadcast %cst_117 : f32 to vector<8x32xf32>
    %379 = arith.addf %377, %378 : vector<8x32xf32>
    %380 = vector.extract_strided_slice %369 {offsets = [0, 64], sizes = [8, 32], strides = [1, 1]} : vector<8x128xf32> to vector<8x32xf32>
    %cst_118 = arith.constant 5.000000e-01 : f32
    %381 = vector.broadcast %cst_118 : f32 to vector<8x32xf32>
    %382 = arith.mulf %381, %380 : vector<8x32xf32>
    %cst_119 = arith.constant 5.000000e-01 : f32
    %383 = vector.broadcast %cst_119 : f32 to vector<8x32xf32>
    %384 = arith.addf %382, %383 : vector<8x32xf32>
    %385 = vector.extract_strided_slice %369 {offsets = [0, 96], sizes = [8, 32], strides = [1, 1]} : vector<8x128xf32> to vector<8x32xf32>
    %386 = arith.mulf %379, %363 : vector<8x32xf32>
    %387 = arith.mulf %374, %385 : vector<8x32xf32>
    %388 = arith.addf %386, %387 : vector<8x32xf32>
    %389 = math.tanh %388 : vector<8x32xf32>
    %390 = arith.mulf %384, %389 : vector<8x32xf32>
    %391 = vector.extract_strided_slice %12 {offsets = [120, 0], sizes = [8, 128], strides = [1, 1]} : vector<128x128xf32> to vector<8x128xf32>
    %cst_120 = arith.constant dense<0.000000e+00> : vector<8x128xf32>
    %392 = tpu.matmul %390, %13, %cst_120 {dimension_numbers = #tpu.dot_dimension_numbers<[1], [0], [0], [1], [0, 0, 1, 1], [], []>} : vector<8x32xf32>, vector<32x128xf32>, vector<8x128xf32> -> vector<8x128xf32>
    %393 = arith.addf %391, %392 : vector<8x128xf32>
    %394 = math.tanh %393 : vector<8x128xf32>
    %395 = vector.extract_strided_slice %394 {offsets = [0, 0], sizes = [8, 32], strides = [1, 1]} : vector<8x128xf32> to vector<8x32xf32>
    %cst_121 = arith.constant 5.000000e-01 : f32
    %396 = vector.broadcast %cst_121 : f32 to vector<8x32xf32>
    %397 = arith.mulf %396, %395 : vector<8x32xf32>
    %cst_122 = arith.constant 5.000000e-01 : f32
    %398 = vector.broadcast %cst_122 : f32 to vector<8x32xf32>
    %399 = arith.addf %397, %398 : vector<8x32xf32>
    %400 = vector.extract_strided_slice %394 {offsets = [0, 32], sizes = [8, 32], strides = [1, 1]} : vector<8x128xf32> to vector<8x32xf32>
    %cst_123 = arith.constant 5.000000e-01 : f32
    %401 = vector.broadcast %cst_123 : f32 to vector<8x32xf32>
    %402 = arith.mulf %401, %400 : vector<8x32xf32>
    %cst_124 = arith.constant 5.000000e-01 : f32
    %403 = vector.broadcast %cst_124 : f32 to vector<8x32xf32>
    %404 = arith.addf %402, %403 : vector<8x32xf32>
    %405 = vector.extract_strided_slice %394 {offsets = [0, 64], sizes = [8, 32], strides = [1, 1]} : vector<8x128xf32> to vector<8x32xf32>
    %cst_125 = arith.constant 5.000000e-01 : f32
    %406 = vector.broadcast %cst_125 : f32 to vector<8x32xf32>
    %407 = arith.mulf %406, %405 : vector<8x32xf32>
    %cst_126 = arith.constant 5.000000e-01 : f32
    %408 = vector.broadcast %cst_126 : f32 to vector<8x32xf32>
    %409 = arith.addf %407, %408 : vector<8x32xf32>
    %410 = vector.extract_strided_slice %394 {offsets = [0, 96], sizes = [8, 32], strides = [1, 1]} : vector<8x128xf32> to vector<8x32xf32>
    %411 = arith.mulf %404, %388 : vector<8x32xf32>
    %412 = arith.mulf %399, %410 : vector<8x32xf32>
    %413 = arith.addf %411, %412 : vector<8x32xf32>
    %414 = math.tanh %413 : vector<8x32xf32>
    %415 = arith.mulf %409, %414 : vector<8x32xf32>
    %c0_127 = arith.constant 0 : index
    %c0_128 = arith.constant 0 : index
    %416 = vector.load %arg6[%c0_127, %c0_128] : memref<1x32xf32, #tpu.memory_space<vmem>>, vector<1x32xf32>
    %417 = vector.broadcast %416 : vector<1x32xf32> to vector<8x32xf32>
    %418 = arith.mulf %415, %417 : vector<8x32xf32>
    %cst_129 = arith.constant dense<0.000000e+00> : vector<8xf32>
    %419 = vector.multi_reduction <add>, %418, %cst_129 [1] : vector<8x32xf32> to vector<8xf32>
    %420 = vector.shape_cast %419 : vector<8xf32> to vector<8x1xf32>
    %c0_130 = arith.constant 0 : index
    %c0_131 = arith.constant 0 : index
    %421 = vector.load %arg7[%c0_130, %c0_131] : memref<1x1xf32, #tpu.memory_space<vmem>>, vector<1x1xf32>
    %422 = vector.broadcast %421 : vector<1x1xf32> to vector<8x1xf32>
    %423 = arith.addf %420, %422 : vector<8x1xf32>
    %c0_132 = arith.constant 0 : index
    %c0_133 = arith.constant 0 : index
    %424 = vector.load %arg8[%c0_132, %c0_133] : memref<8x1xf32, #tpu.memory_space<vmem>>, vector<8x1xf32>
    tpu.vector_store %arg8[%c0_132, %c0_133], %423 {strides = array<i32>} : memref<8x1xf32, #tpu.memory_space<vmem>>, vector<8x1xf32>,
    return
  }
}

</mosaic_0001>

<llo_original>
// kernel: tpu_custom_call.1
$region0: #{tpu_custom_call.1}
  #allocation0 [shape = 'u32[]', space=smem, size = 0x4, offset = 0x4, fixed_abs, tag = 'smem constant byte address 0x4 - core index']
  #allocation1 [shape = 'u32[144,128]{1,0:T(1,128)}', space=vmem, size = 0x12000, scoped, tag = 'internal scratch']
  #allocation2 [shape = 'f32[1,1]{1,0:T(1,128)S(1)}', space=vmem, size = 0x200, scoped, tag = 'scoped memory for tpu_custom_call.1']
  %s0 = inlined_call_operand.vmem [shape: f32[128,3], index: 0, kind: input, shape index: {}]
  %s1 = inlined_call_operand.vmem [shape: f32[3,16], index: 1, kind: input, shape index: {}]
  %s2 = inlined_call_operand.vmem [shape: f32[1,16], index: 2, kind: input, shape index: {}]
  %s3 = inlined_call_operand.vmem [shape: f32[16,128], index: 3, kind: input, shape index: {}]
  %s4 = inlined_call_operand.vmem [shape: f32[32,128], index: 4, kind: input, shape index: {}]
  %s5 = inlined_call_operand.vmem [shape: f32[1,128], index: 5, kind: input, shape index: {}]
  %s6 = inlined_call_operand.vmem [shape: f32[1,32], index: 6, kind: input, shape index: {}]
  %s7 = inlined_call_operand.<no memory space> [shape: f32[1,1], index: 7, kind: input, shape index: {}]
  %s8 = inlined_call_operand.vmem [shape: f32[8,1], index: 8, kind: output, shape index: {}]
  %s9 = sld [smem:[#allocation0]]
  $region42: #{tpu_custom_call.1} parent=0
    _
  %s11 = ssub.s32 1, %s9
  %s12 = scalar_select 0, %s11, %s9
  %v13 = vstv %s7
  %14 = vst [vmem:[#allocation2] sm:$0x1] %v13
  // Predicated region
  $region2: #{tpu_custom_call.1} parent=0 // pred_check
    _
  $region3: #{tpu_custom_call.1} parent=0 // pred_check_branch
    %16 = sbr.rel (0) target = $region5
  $region4: #{tpu_custom_call.1} parent=0 // pred_region
    _
  $region5: #{tpu_custom_call.1} parent=0 // pred_fallthru
    _
  // Predicated region
  $region6: #{tpu_custom_call.1} parent=0 // pred_check
    _
  $region7: #{tpu_custom_call.1} parent=0 // pred_check_branch
    %18 = sbr.rel (0) target = $region9
  $region8: #{tpu_custom_call.1} parent=0 // pred_region
    _
  $region9: #{tpu_custom_call.1} parent=0 // pred_fallthru
    _
  // Predicated region
  $region10: #{tpu_custom_call.1} parent=0 // pred_check
    _
  $region11: #{tpu_custom_call.1} parent=0 // pred_check_branch
    %20 = sbr.rel (0) target = $region13
  $region12: #{tpu_custom_call.1} parent=0 // pred_region
    _
  $region13: #{tpu_custom_call.1} parent=0 // pred_fallthru
    _
  // Predicated region
  $region14: #{tpu_custom_call.1} parent=0 // pred_check
    _
  $region15: #{tpu_custom_call.1} parent=0 // pred_check_branch
    %22 = sbr.rel (0) target = $region17
  $region16: #{tpu_custom_call.1} parent=0 // pred_region
    _
  $region17: #{tpu_custom_call.1} parent=0 // pred_fallthru
    _
  // Predicated region
  $region18: #{tpu_custom_call.1} parent=0 // pred_check
    _
  $region19: #{tpu_custom_call.1} parent=0 // pred_check_branch
    %24 = sbr.rel (0) target = $region21
  $region20: #{tpu_custom_call.1} parent=0 // pred_region
    _
  $region21: #{tpu_custom_call.1} parent=0 // pred_fallthru
    _
  // Predicated region
  $region22: #{tpu_custom_call.1} parent=0 // pred_check
    _
  $region23: #{tpu_custom_call.1} parent=0 // pred_check_branch
    %26 = sbr.rel (0) target = $region25
  $region24: #{tpu_custom_call.1} parent=0 // pred_region
    _
  $region25: #{tpu_custom_call.1} parent=0 // pred_fallthru
    _
  // Predicated region
  $region26: #{tpu_custom_call.1} parent=0 // pred_check
    _
  $region27: #{tpu_custom_call.1} parent=0 // pred_check_branch
    %28 = sbr.rel (0) target = $region29
  $region28: #{tpu_custom_call.1} parent=0 // pred_region
    _
  $region29: #{tpu_custom_call.1} parent=0 // pred_fallthru
    _
  // Predicated region
  $region30: #{tpu_custom_call.1} parent=0 // pred_check
    _
  $region31: #{tpu_custom_call.1} parent=0 // pred_check_branch
    %30 = sbr.rel (0) target = $region33
  $region32: #{tpu_custom_call.1} parent=0 // pred_region
    _
  $region33: #{tpu_custom_call.1} parent=0 // pred_fallthru
    _
  %v31 = vld [vmem:[%s0] sm:$0xff]
  %v32 = vld [vmem:[%s0 + $0x8] sm:$0xff]
  %v33 = vld [vmem:[%s0 + $0x10] sm:$0xff]
  %v34 = vld [vmem:[%s0 + $0x18] sm:$0xff]
  %v35 = vld [vmem:[%s0 + $0x20] sm:$0xff]
  %v36 = vld [vmem:[%s0 + $0x28] sm:$0xff]
  %v37 = vld [vmem:[%s0 + $0x30] sm:$0xff]
  %v38 = vld [vmem:[%s0 + $0x38] sm:$0xff]
  %v39 = vld [vmem:[%s0 + $0x40] sm:$0xff]
  %v40 = vld [vmem:[%s0 + $0x48] sm:$0xff]
  %v41 = vld [vmem:[%s0 + $0x50] sm:$0xff]
  %v42 = vld [vmem:[%s0 + $0x58] sm:$0xff]
  %v43 = vld [vmem:[%s0 + $0x60] sm:$0xff]
  %v44 = vld [vmem:[%s0 + $0x68] sm:$0xff]
  %v45 = vld [vmem:[%s0 + $0x70] sm:$0xff]
  %v46 = vld [vmem:[%s0 + $0x78] sm:$0xff]
  %v47 = vld [vmem:[%s1] sm:$0x7]
  %v48 = vld [vmem:[%s2] sm:$0x1]
  %v50 = vlaneseq
  %v51 = vshrl.u32 %v50, 7
  %v52 = vsub.s32 0, %v51
  %v53 = vrot.slane %v48, %v52
  %vm55 = vcmask 23552
  %v57 = vsel %vm55, %v31, 0
  %v60 = vsel %vm55, %v32, 0
  %v63 = vsel %vm55, %v33, 0
  %v66 = vsel %vm55, %v34, 0
  %v69 = vsel %vm55, %v35, 0
  %v72 = vsel %vm55, %v36, 0
  %v75 = vsel %vm55, %v37, 0
  %v78 = vsel %vm55, %v38, 0
  %v81 = vsel %vm55, %v39, 0
  %v84 = vsel %vm55, %v40, 0
  %v87 = vsel %vm55, %v41, 0
  %v90 = vsel %vm55, %v42, 0
  %v93 = vsel %vm55, %v43, 0
  %v96 = vsel %vm55, %v44, 0
  %v99 = vsel %vm55, %v45, 0
  %v102 = vsel %vm55, %v46, 0
  %vm104 = vcmask 1042432
  %v106 = vsel %vm104, %v47, 0
  %108 = vmatprep.subr.mxu0 0.0
  %109 = vmatpush1.msra.mxu0 %v106
  %110 = vmatprep.subr.mxu0 0.0
  %111 = vmatpush1.msra.mxu0 0.0
  %112 = vmatprep.subr.mxu0 0.0
  %113 = vmatpush1.msra.mxu0 0.0
  %114 = vmatprep.subr.mxu0 0.0
  %115 = vmatpush1.msra.mxu0 0.0
  %116 = vmatprep.subr.mxu0 0.0
  %117 = vmatpush1.msra.mxu0 0.0
  %118 = vmatprep.subr.mxu0 0.0
  %119 = vmatpush1.msra.mxu0 0.0
  %120 = vmatprep.subr.mxu0 0.0
  %121 = vmatpush1.msra.mxu0 0.0
  %122 = vmatprep.subr.mxu0 0.0
  %123 = vmatpush1.msra.mxu0 0.0
  %124 = vmatprep.subr.mxu0 0.0
  %125 = vmatpush1.msra.mxu0 0.0
  %126 = vmatprep.subr.mxu0 0.0
  %127 = vmatpush1.msra.mxu0 0.0
  %128 = vmatprep.subr.mxu0 0.0
  %129 = vmatpush1.msra.mxu0 0.0
  %130 = vmatprep.subr.mxu0 0.0
  %131 = vmatpush1.msra.mxu0 0.0
  %132 = vmatprep.subr.mxu0 0.0
  %133 = vmatpush1.msra.mxu0 0.0
  %134 = vmatprep.subr.mxu0 0.0
  %135 = vmatpush1.msra.mxu0 0.0
  %136 = vmatprep.subr.mxu0 0.0
  %137 = vmatpush1.msra.mxu0 0.0
  %138 = vmatprep.subr.mxu0 0.0
  %139 = vmatpush1.msra.mxu0 0.0
  %140 = vmatprep.subr.mxu0 0.0
  %141 = vmatpush1.msra.mxu0 0.0
  %142 = vmatprep.subr.mxu0 0.0
  %143 = vmatpush1.msra.mxu0 0.0
  %144 = vmatprep.subr.mxu0 0.0
  %145 = vmatpush1.msra.mxu0 0.0
  %146 = vmatprep.subr.mxu0 0.0
  %147 = vmatpush1.msra.mxu0 0.0
  %148 = vmatprep.subr.mxu0 0.0
  %149 = vmatpush1.msra.mxu0 0.0
  %150 = vmatprep.subr.mxu0 0.0
  %151 = vmatpush1.msra.mxu0 0.0
  %152 = vmatprep.subr.mxu0 0.0
  %153 = vmatpush1.msra.mxu0 0.0
  %154 = vmatprep.subr.mxu0 0.0
  %155 = vmatpush1.msra.mxu0 0.0
  %156 = vmatprep.subr.mxu0 0.0
  %157 = vmatpush1.msra.mxu0 0.0
  %158 = vmatprep.subr.mxu0 0.0
  %159 = vmatpush1.msra.mxu0 0.0
  %160 = vmatprep.subr.mxu0 0.0
  %161 = vmatpush1.msra.mxu0 0.0
  %162 = vmatprep.subr.mxu0 0.0
  %163 = vmatpush1.msra.mxu0 0.0
  %164 = vmatprep.subr.mxu0 0.0
  %165 = vmatpush1.msra.mxu0 0.0
  %166 = vmatprep.subr.mxu0 0.0
  %167 = vmatpush1.msra.mxu0 0.0
  %168 = vmatprep.subr.mxu0 0.0
  %169 = vmatpush1.msra.mxu0 0.0
  %170 = vmatprep.subr.mxu0 0.0
  %171 = vmatpush1.msra.mxu0 0.0
  %172 = vmatprep.mubr.f32.mxu0 0.0
  %173 = vmatmul.mubr.f32.gmra.mrb[0].mxu0 %v57
  %v174 = vpop.f32.mrb[0].mxu0
  %v175 = vadd.f32 %v53, %v174
  %v176 = vpop.f32.mrb[0].mxu0
  %177 = vmatprep.mubr.f32.mxu0 0.0
  %178 = vmatmul.mubr.f32.gmra.mrb[0].mxu0 %v60
  %v179 = vpop.f32.mrb[0].mxu0
  %v180 = vadd.f32 %v53, %v179
  %v181 = vpop.f32.mrb[0].mxu0
  %182 = vmatprep.mubr.f32.mxu0 0.0
  %183 = vmatmul.mubr.f32.gmra.mrb[0].mxu0 %v63
  %v184 = vpop.f32.mrb[0].mxu0
  %v185 = vadd.f32 %v53, %v184
  %v186 = vpop.f32.mrb[0].mxu0
  %187 = vmatprep.mubr.f32.mxu0 0.0
  %188 = vmatmul.mubr.f32.gmra.mrb[0].mxu0 %v66
  %v189 = vpop.f32.mrb[0].mxu0
  %v190 = vadd.f32 %v53, %v189
  %v191 = vpop.f32.mrb[0].mxu0
  %192 = vmatprep.mubr.f32.mxu0 0.0
  %193 = vmatmul.mubr.f32.gmra.mrb[0].mxu0 %v69
  %v194 = vpop.f32.mrb[0].mxu0
  %v195 = vadd.f32 %v53, %v194
  %v196 = vpop.f32.mrb[0].mxu0
  %197 = vmatprep.mubr.f32.mxu0 0.0
  %198 = vmatmul.mubr.f32.gmra.mrb[0].mxu0 %v72
  %v199 = vpop.f32.mrb[0].mxu0
  %v200 = vadd.f32 %v53, %v199
  %v201 = vpop.f32.mrb[0].mxu0
  %202 = vmatprep.mubr.f32.mxu0 0.0
  %203 = vmatmul.mubr.f32.gmra.mrb[0].mxu0 %v75
  %v204 = vpop.f32.mrb[0].mxu0
  %v205 = vadd.f32 %v53, %v204
  %v206 = vpop.f32.mrb[0].mxu0
  %207 = vmatprep.mubr.f32.mxu0 0.0
  %208 = vmatmul.mubr.f32.gmra.mrb[0].mxu0 %v78
  %v209 = vpop.f32.mrb[0].mxu0
  %v210 = vadd.f32 %v53, %v209
  %v211 = vpop.f32.mrb[0].mxu0
  %212 = vmatprep.mubr.f32.mxu0 0.0
  %213 = vmatmul.mubr.f32.gmra.mrb[0].mxu0 %v81
  %v214 = vpop.f32.mrb[0].mxu0
  %v215 = vadd.f32 %v53, %v214
  %v216 = vpop.f32.mrb[0].mxu0
  %217 = vmatprep.mubr.f32.mxu0 0.0
  %218 = vmatmul.mubr.f32.gmra.mrb[0].mxu0 %v84
  %v219 = vpop.f32.mrb[0].mxu0
  %v220 = vadd.f32 %v53, %v219
  %v221 = vpop.f32.mrb[0].mxu0
  %222 = vmatprep.mubr.f32.mxu0 0.0
  %223 = vmatmul.mubr.f32.gmra.mrb[0].mxu0 %v87
  %v224 = vpop.f32.mrb[0].mxu0
  %v225 = vadd.f32 %v53, %v224
  %v226 = vpop.f32.mrb[0].mxu0
  %227 = vmatprep.mubr.f32.mxu0 0.0
  %228 = vmatmul.mubr.f32.gmra.mrb[0].mxu0 %v90
  %v229 = vpop.f32.mrb[0].mxu0
  %v230 = vadd.f32 %v53, %v229
  %v231 = vpop.f32.mrb[0].mxu0
  %232 = vmatprep.mubr.f32.mxu0 0.0
  %233 = vmatmul.mubr.f32.gmra.mrb[0].mxu0 %v93
  %v234 = vpop.f32.mrb[0].mxu0
  %v235 = vadd.f32 %v53, %v234
  %v236 = vpop.f32.mrb[0].mxu0
  %237 = vmatprep.mubr.f32.mxu0 0.0
  %238 = vmatmul.mubr.f32.gmra.mrb[0].mxu0 %v96
  %v239 = vpop.f32.mrb[0].mxu0
  %v240 = vadd.f32 %v53, %v239
  %v241 = vpop.f32.mrb[0].mxu0
  %242 = vmatprep.mubr.f32.mxu0 0.0
  %243 = vmatmul.mubr.f32.gmra.mrb[0].mxu0 %v99
  %v244 = vpop.f32.mrb[0].mxu0
  %v245 = vadd.f32 %v53, %v244
  %v246 = vpop.f32.mrb[0].mxu0
  %247 = vmatprep.mubr.f32.mxu0 0.0
  %248 = vmatmul.mubr.f32.gmra.mrb[0].mxu0 %v102
  %v249 = vpop.f32.mrb[0].mxu0
  %v250 = vadd.f32 %v53, %v249
  %v251 = vpop.f32.mrb[0].mxu0
  %252 = vdwg.mxu0
  %v253 = vmax.f32 %v175, 0.0
  %v254 = vmax.f32 %v180, 0.0
  %v255 = vmax.f32 %v185, 0.0
  %v256 = vmax.f32 %v190, 0.0
  %v257 = vmax.f32 %v195, 0.0
  %v258 = vmax.f32 %v200, 0.0
  %v259 = vmax.f32 %v205, 0.0
  %v260 = vmax.f32 %v210, 0.0
  %v261 = vmax.f32 %v215, 0.0
  %v262 = vmax.f32 %v220, 0.0
  %v263 = vmax.f32 %v225, 0.0
  %v264 = vmax.f32 %v230, 0.0
  %v265 = vmax.f32 %v235, 0.0
  %v266 = vmax.f32 %v240, 0.0
  %v267 = vmax.f32 %v245, 0.0
  %v268 = vmax.f32 %v250, 0.0
  %v269 = vld [vmem:[%s3] sm:$0xff]
  %v270 = vld [vmem:[%s3 + $0x8] sm:$0xff]
  %v271 = vld [vmem:[%s5] sm:$0x1]
  %v273 = vlaneseq
  %v274 = vshrl.u32 %v273, 7
  %v275 = vsub.s32 0, %v274
  %v276 = vrot.slane %v271, %v275
  %vm278 = vcmask 130048
  %v280 = vsel %vm278, %v253, 0
  %v283 = vsel %vm278, %v254, 0
  %v286 = vsel %vm278, %v255, 0
  %v289 = vsel %vm278, %v256, 0
  %v292 = vsel %vm278, %v257, 0
  %v295 = vsel %vm278, %v258, 0
  %v298 = vsel %vm278, %v259, 0
  %v301 = vsel %vm278, %v260, 0
  %v304 = vsel %vm278, %v261, 0
  %v307 = vsel %vm278, %v262, 0
  %v310 = vsel %vm278, %v263, 0
  %v313 = vsel %vm278, %v264, 0
  %v316 = vsel %vm278, %v265, 0
  %v319 = vsel %vm278, %v266, 0
  %v322 = vsel %vm278, %v267, 0
  %v325 = vsel %vm278, %v268, 0
  %327 = vmatprep.subr.mxu0 0.0
  %328 = vmatpush1.msra.mxu0 %v269
  %329 = vmatprep.subr.mxu0 0.0
  %330 = vmatpush1.msra.mxu0 %v270
  %331 = vmatprep.subr.mxu0 0.0
  %332 = vmatpush1.msra.mxu0 0.0
  %333 = vmatprep.subr.mxu0 0.0
  %334 = vmatpush1.msra.mxu0 0.0
  %335 = vmatprep.subr.mxu0 0.0
  %336 = vmatpush1.msra.mxu0 0.0
  %337 = vmatprep.subr.mxu0 0.0
  %338 = vmatpush1.msra.mxu0 0.0
  %339 = vmatprep.subr.mxu0 0.0
  %340 = vmatpush1.msra.mxu0 0.0
  %341 = vmatprep.subr.mxu0 0.0
  %342 = vmatpush1.msra.mxu0 0.0
  %343 = vmatprep.subr.mxu0 0.0
  %344 = vmatpush1.msra.mxu0 0.0
  %345 = vmatprep.subr.mxu0 0.0
  %346 = vmatpush1.msra.mxu0 0.0
  %347 = vmatprep.subr.mxu0 0.0
  %348 = vmatpush1.msra.mxu0 0.0
  %349 = vmatprep.subr.mxu0 0.0
  %350 = vmatpush1.msra.mxu0 0.0
  %351 = vmatprep.subr.mxu0 0.0
  %352 = vmatpush1.msra.mxu0 0.0
  %353 = vmatprep.subr.mxu0 0.0
  %354 = vmatpush1.msra.mxu0 0.0
  %355 = vmatprep.subr.mxu0 0.0
  %356 = vmatpush1.msra.mxu0 0.0
  %357 = vmatprep.subr.mxu0 0.0
  %358 = vmatpush1.msra.mxu0 0.0
  %359 = vmatprep.subr.mxu0 0.0
  %360 = vmatpush1.msra.mxu0 0.0
  %361 = vmatprep.subr.mxu0 0.0
  %362 = vmatpush1.msra.mxu0 0.0
  %363 = vmatprep.subr.mxu0 0.0
  %364 = vmatpush1.msra.mxu0 0.0
  %365 = vmatprep.subr.mxu0 0.0
  %366 = vmatpush1.msra.mxu0 0.0
  %367 = vmatprep.subr.mxu0 0.0
  %368 = vmatpush1.msra.mxu0 0.0
  %369 = vmatprep.subr.mxu0 0.0
  %370 = vmatpush1.msra.mxu0 0.0
  %371 = vmatprep.subr.mxu0 0.0
  %372 = vmatpush1.msra.mxu0 0.0
  %373 = vmatprep.subr.mxu0 0.0
  %374 = vmatpush1.msra.mxu0 0.0
  %375 = vmatprep.subr.mxu0 0.0
  %376 = vmatpush1.msra.mxu0 0.0
  %377 = vmatprep.subr.mxu0 0.0
  %378 = vmatpush1.msra.mxu0 0.0
  %379 = vmatprep.subr.mxu0 0.0
  %380 = vmatpush1.msra.mxu0 0.0
  %381 = vmatprep.subr.mxu0 0.0
  %382 = vmatpush1.msra.mxu0 0.0
  %383 = vmatprep.subr.mxu0 0.0
  %384 = vmatpush1.msra.mxu0 0.0
  %385 = vmatprep.subr.mxu0 0.0
  %386 = vmatpush1.msra.mxu0 0.0
  %387 = vmatprep.subr.mxu0 0.0
  %388 = vmatpush1.msra.mxu0 0.0
  %389 = vmatprep.subr.mxu0 0.0
  %390 = vmatpush1.msra.mxu0 0.0
  %391 = vmatprep.mubr.f32.mxu0 0.0
  %392 = vmatmul.mubr.f32.gmra.mrb[0].mxu0 %v280
  %v393 = vpop.f32.mrb[0].mxu0
  %v394 = vadd.f32 %v276, %v393
  %v395 = vpop.f32.mrb[0].mxu0
  %396 = vmatprep.mubr.f32.mxu0 0.0
  %397 = vmatmul.mubr.f32.gmra.mrb[0].mxu0 %v283
  %v398 = vpop.f32.mrb[0].mxu0
  %v399 = vadd.f32 %v276, %v398
  %v400 = vpop.f32.mrb[0].mxu0
  %401 = vmatprep.mubr.f32.mxu0 0.0
  %402 = vmatmul.mubr.f32.gmra.mrb[0].mxu0 %v286
  %v403 = vpop.f32.mrb[0].mxu0
  %v404 = vadd.f32 %v276, %v403
  %v405 = vpop.f32.mrb[0].mxu0
  %406 = vmatprep.mubr.f32.mxu0 0.0
  %407 = vmatmul.mubr.f32.gmra.mrb[0].mxu0 %v289
  %v408 = vpop.f32.mrb[0].mxu0
  %v409 = vadd.f32 %v276, %v408
  %v410 = vpop.f32.mrb[0].mxu0
  %411 = vmatprep.mubr.f32.mxu0 0.0
  %412 = vmatmul.mubr.f32.gmra.mrb[0].mxu0 %v292
  %v413 = vpop.f32.mrb[0].mxu0
  %v414 = vadd.f32 %v276, %v413
  %v415 = vpop.f32.mrb[0].mxu0
  %416 = vmatprep.mubr.f32.mxu0 0.0
  %417 = vmatmul.mubr.f32.gmra.mrb[0].mxu0 %v295
  %v418 = vpop.f32.mrb[0].mxu0
  %v419 = vadd.f32 %v276, %v418
  %v420 = vpop.f32.mrb[0].mxu0
  %421 = vmatprep.mubr.f32.mxu0 0.0
  %422 = vmatmul.mubr.f32.gmra.mrb[0].mxu0 %v298
  %v423 = vpop.f32.mrb[0].mxu0
  %v424 = vadd.f32 %v276, %v423
  %v425 = vpop.f32.mrb[0].mxu0
  %426 = vmatprep.mubr.f32.mxu0 0.0
  %427 = vmatmul.mubr.f32.gmra.mrb[0].mxu0 %v301
  %v428 = vpop.f32.mrb[0].mxu0
  %v429 = vadd.f32 %v276, %v428
  %v430 = vpop.f32.mrb[0].mxu0
  %431 = vmatprep.mubr.f32.mxu0 0.0
  %432 = vmatmul.mubr.f32.gmra.mrb[0].mxu0 %v304
  %v433 = vpop.f32.mrb[0].mxu0
  %v434 = vadd.f32 %v276, %v433
  %v435 = vpop.f32.mrb[0].mxu0
  %436 = vmatprep.mubr.f32.mxu0 0.0
  %437 = vmatmul.mubr.f32.gmra.mrb[0].mxu0 %v307
  %v438 = vpop.f32.mrb[0].mxu0
  %v439 = vadd.f32 %v276, %v438
  %v440 = vpop.f32.mrb[0].mxu0
  %441 = vmatprep.mubr.f32.mxu0 0.0
  %442 = vmatmul.mubr.f32.gmra.mrb[0].mxu0 %v310
  %v443 = vpop.f32.mrb[0].mxu0
  %v444 = vadd.f32 %v276, %v443
  %v445 = vpop.f32.mrb[0].mxu0
  %446 = vmatprep.mubr.f32.mxu0 0.0
  %447 = vmatmul.mubr.f32.gmra.mrb[0].mxu0 %v313
  %v448 = vpop.f32.mrb[0].mxu0
  %v449 = vadd.f32 %v276, %v448
  %v450 = vpop.f32.mrb[0].mxu0
  %451 = vmatprep.mubr.f32.mxu0 0.0
  %452 = vmatmul.mubr.f32.gmra.mrb[0].mxu0 %v316
  %v453 = vpop.f32.mrb[0].mxu0
  %v454 = vadd.f32 %v276, %v453
  %v455 = vpop.f32.mrb[0].mxu0
  %456 = vmatprep.mubr.f32.mxu0 0.0
  %457 = vmatmul.mubr.f32.gmra.mrb[0].mxu0 %v319
  %v458 = vpop.f32.mrb[0].mxu0
  %v459 = vadd.f32 %v276, %v458
  %v460 = vpop.f32.mrb[0].mxu0
  %461 = vmatprep.mubr.f32.mxu0 0.0
  %462 = vmatmul.mubr.f32.gmra.mrb[0].mxu0 %v322
  %v463 = vpop.f32.mrb[0].mxu0
  %v464 = vadd.f32 %v276, %v463
  %v465 = vpop.f32.mrb[0].mxu0
  %466 = vmatprep.mubr.f32.mxu0 0.0
  %467 = vmatmul.mubr.f32.gmra.mrb[0].mxu0 %v325
  %v468 = vpop.f32.mrb[0].mxu0
  %v469 = vadd.f32 %v276, %v468
  %v470 = vpop.f32.mrb[0].mxu0
  %471 = vdwg.mxu0
  %v472 = vld [vmem:[%s4] sm:$0xff]
  %v473 = vld [vmem:[%s4 + $0x8] sm:$0xff]
  %v474 = vld [vmem:[%s4 + $0x10] sm:$0xff]
  %v475 = vld [vmem:[%s4 + $0x18] sm:$0xff]
  %vm476 = vcmask 261120
  %v478 = vsel %vm476, 0.0, 0
  %480 = vmatprep.subr.mxu0 0.0
  %481 = vmatpush1.msra.mxu0 %v472
  %482 = vmatprep.subr.mxu0 0.0
  %483 = vmatpush1.msra.mxu0 %v473
  %484 = vmatprep.subr.mxu0 0.0
  %485 = vmatpush1.msra.mxu0 %v474
  %486 = vmatprep.subr.mxu0 0.0
  %487 = vmatpush1.msra.mxu0 %v475
  %488 = vmatprep.subr.mxu0 0.0
  %489 = vmatpush1.msra.mxu0 0.0
  %490 = vmatprep.subr.mxu0 0.0
  %491 = vmatpush1.msra.mxu0 0.0
  %492 = vmatprep.subr.mxu0 0.0
  %493 = vmatpush1.msra.mxu0 0.0
  %494 = vmatprep.subr.mxu0 0.0
  %495 = vmatpush1.msra.mxu0 0.0
  %496 = vmatprep.subr.mxu0 0.0
  %497 = vmatpush1.msra.mxu0 0.0
  %498 = vmatprep.subr.mxu0 0.0
  %499 = vmatpush1.msra.mxu0 0.0
  %500 = vmatprep.subr.mxu0 0.0
  %501 = vmatpush1.msra.mxu0 0.0
  %502 = vmatprep.subr.mxu0 0.0
  %503 = vmatpush1.msra.mxu0 0.0
  %504 = vmatprep.subr.mxu0 0.0
  %505 = vmatpush1.msra.mxu0 0.0
  %506 = vmatprep.subr.mxu0 0.0
  %507 = vmatpush1.msra.mxu0 0.0
  %508 = vmatprep.subr.mxu0 0.0
  %509 = vmatpush1.msra.mxu0 0.0
  %510 = vmatprep.subr.mxu0 0.0
  %511 = vmatpush1.msra.mxu0 0.0
  %512 = vmatprep.subr.mxu0 0.0
  %513 = vmatpush1.msra.mxu0 0.0
  %514 = vmatprep.subr.mxu0 0.0
  %515 = vmatpush1.msra.mxu0 0.0
  %516 = vmatprep.subr.mxu0 0.0
  %517 = vmatpush1.msra.mxu0 0.0
  %518 = vmatprep.subr.mxu0 0.0
  %519 = vmatpush1.msra.mxu0 0.0
  %520 = vmatprep.subr.mxu0 0.0
  %521 = vmatpush1.msra.mxu0 0.0
  %522 = vmatprep.subr.mxu0 0.0
  %523 = vmatpush1.msra.mxu0 0.0
  %524 = vmatprep.subr.mxu0 0.0
  %525 = vmatpush1.msra.mxu0 0.0
  %526 = vmatprep.subr.mxu0 0.0
  %527 = vmatpush1.msra.mxu0 0.0
  %528 = vmatprep.subr.mxu0 0.0
  %529 = vmatpush1.msra.mxu0 0.0
  %530 = vmatprep.subr.mxu0 0.0
  %531 = vmatpush1.msra.mxu0 0.0
  %532 = vmatprep.subr.mxu0 0.0
  %533 = vmatpush1.msra.mxu0 0.0
  %534 = vmatprep.subr.mxu0 0.0
  %535 = vmatpush1.msra.mxu0 0.0
  %536 = vmatprep.subr.mxu0 0.0
  %537 = vmatpush1.msra.mxu0 0.0
  %538 = vmatprep.subr.mxu0 0.0
  %539 = vmatpush1.msra.mxu0 0.0
  %540 = vmatprep.subr.mxu0 0.0
  %541 = vmatpush1.msra.mxu0 0.0
  %542 = vmatprep.subr.mxu0 0.0
  %543 = vmatpush1.msra.mxu0 0.0
  %544 = vmatprep.mubr.f32.mxu0 0.0
  %545 = vmatmul.mubr.f32.gmra.mrb[0].mxu0 %v478
  %v546 = vpop.f32.mrb[0].mxu0
  %v547 = vadd.f32 0.0, %v546
  %v548 = vpop.f32.mrb[0].mxu0
  %549 = vdwg.mxu0
  %v550 = vadd.f32 %v394, %v547
  %v551 = vtanh.pop %v550
  %v552 = vmul.f32 %v551, 0.5
  %v553 = vadd.f32 %v552, 0.5
  %v554 = vmul.f32 %v553, 0.0
  %556 = vrot.lane.b32.xlu0 %v551, 32
  %v557 = vpop.permute.xlu0 %556
  %v559 = vmul.f32 %v553, %v557
  %561 = vrot.lane.b32.xlu0 %v559, 32
  %v562 = vpop.permute.xlu0 %561
  %v564 = vadd.f32 %v554, %v562
  %v565 = vtanh.pop %v564
  %567 = vrot.lane.b32.xlu0 %v565, 32
  %v568 = vpop.permute.xlu0 %567
  %v570 = vmul.f32 %v553, %v568
  %572 = vrot.lane.b32.xlu0 %v570, 64
  %v573 = vpop.permute.xlu0 %572
  %v574 = vsel %vm476, %v573, 0
  %576 = vmatprep.subr.mxu0 0.0
  %577 = vmatpush1.msra.mxu0 %v472
  %578 = vmatprep.subr.mxu0 0.0
  %579 = vmatpush1.msra.mxu0 %v473
  %580 = vmatprep.subr.mxu0 0.0
  %581 = vmatpush1.msra.mxu0 %v474
  %582 = vmatprep.subr.mxu0 0.0
  %583 = vmatpush1.msra.mxu0 %v475
  %584 = vmatprep.subr.mxu0 0.0
  %585 = vmatpush1.msra.mxu0 0.0
  %586 = vmatprep.subr.mxu0 0.0
  %587 = vmatpush1.msra.mxu0 0.0
  %588 = vmatprep.subr.mxu0 0.0
  %589 = vmatpush1.msra.mxu0 0.0
  %590 = vmatprep.subr.mxu0 0.0
  %591 = vmatpush1.msra.mxu0 0.0
  %592 = vmatprep.subr.mxu0 0.0
  %593 = vmatpush1.msra.mxu0 0.0
  %594 = vmatprep.subr.mxu0 0.0
  %595 = vmatpush1.msra.mxu0 0.0
  %596 = vmatprep.subr.mxu0 0.0
  %597 = vmatpush1.msra.mxu0 0.0
  %598 = vmatprep.subr.mxu0 0.0
  %599 = vmatpush1.msra.mxu0 0.0
  %600 = vmatprep.subr.mxu0 0.0
  %601 = vmatpush1.msra.mxu0 0.0
  %602 = vmatprep.subr.mxu0 0.0
  %603 = vmatpush1.msra.mxu0 0.0
  %604 = vmatprep.subr.mxu0 0.0
  %605 = vmatpush1.msra.mxu0 0.0
  %606 = vmatprep.subr.mxu0 0.0
  %607 = vmatpush1.msra.mxu0 0.0
  %608 = vmatprep.subr.mxu0 0.0
  %609 = vmatpush1.msra.mxu0 0.0
  %610 = vmatprep.subr.mxu0 0.0
  %611 = vmatpush1.msra.mxu0 0.0
  %612 = vmatprep.subr.mxu0 0.0
  %613 = vmatpush1.msra.mxu0 0.0
  %614 = vmatprep.subr.mxu0 0.0
  %615 = vmatpush1.msra.mxu0 0.0
  %616 = vmatprep.subr.mxu0 0.0
  %617 = vmatpush1.msra.mxu0 0.0
  %618 = vmatprep.subr.mxu0 0.0
  %619 = vmatpush1.msra.mxu0 0.0
  %620 = vmatprep.subr.mxu0 0.0
  %621 = vmatpush1.msra.mxu0 0.0
  %622 = vmatprep.subr.mxu0 0.0
  %623 = vmatpush1.msra.mxu0 0.0
  %624 = vmatprep.subr.mxu0 0.0
  %625 = vmatpush1.msra.mxu0 0.0
  %626 = vmatprep.subr.mxu0 0.0
  %627 = vmatpush1.msra.mxu0 0.0
  %628 = vmatprep.subr.mxu0 0.0
  %629 = vmatpush1.msra.mxu0 0.0
  %630 = vmatprep.subr.mxu0 0.0
  %631 = vmatpush1.msra.mxu0 0.0
  %632 = vmatprep.subr.mxu0 0.0
  %633 = vmatpush1.msra.mxu0 0.0
  %634 = vmatprep.subr.mxu0 0.0
  %635 = vmatpush1.msra.mxu0 0.0
  %636 = vmatprep.subr.mxu0 0.0
  %637 = vmatpush1.msra.mxu0 0.0
  %638 = vmatprep.subr.mxu0 0.0
  %639 = vmatpush1.msra.mxu0 0.0
  %640 = vmatprep.mubr.f32.mxu0 0.0
  %641 = vmatmul.mubr.f32.gmra.mrb[0].mxu0 %v574
  %v642 = vpop.f32.mrb[0].mxu0
  %v643 = vadd.f32 0.0, %v642
  %v644 = vpop.f32.mrb[0].mxu0
  %645 = vdwg.mxu0
  %v646 = vadd.f32 %v399, %v643
  %v647 = vtanh.pop %v646
  %v648 = vmul.f32 %v647, 0.5
  %v649 = vadd.f32 %v648, 0.5
  %v650 = vmul.f32 %v649, %v564
  %652 = vrot.lane.b32.xlu0 %v647, 32
  %v653 = vpop.permute.xlu0 %652
  %v655 = vmul.f32 %v649, %v653
  %657 = vrot.lane.b32.xlu0 %v655, 32
  %v658 = vpop.permute.xlu0 %657
  %v660 = vadd.f32 %v650, %v658
  %v661 = vtanh.pop %v660
  %663 = vrot.lane.b32.xlu0 %v661, 32
  %v664 = vpop.permute.xlu0 %663
  %v666 = vmul.f32 %v649, %v664
  %668 = vrot.lane.b32.xlu0 %v666, 64
  %v669 = vpop.permute.xlu0 %668
  %v670 = vsel %vm476, %v669, 0
  %672 = vmatprep.subr.mxu0 0.0
  %673 = vmatpush1.msra.mxu0 %v472
  %674 = vmatprep.subr.mxu0 0.0
  %675 = vmatpush1.msra.mxu0 %v473
  %676 = vmatprep.subr.mxu0 0.0
  %677 = vmatpush1.msra.mxu0 %v474
  %678 = vmatprep.subr.mxu0 0.0
  %679 = vmatpush1.msra.mxu0 %v475
  %680 = vmatprep.subr.mxu0 0.0
  %681 = vmatpush1.msra.mxu0 0.0
  %682 = vmatprep.subr.mxu0 0.0
  %683 = vmatpush1.msra.mxu0 0.0
  %684 = vmatprep.subr.mxu0 0.0
  %685 = vmatpush1.msra.mxu0 0.0
  %686 = vmatprep.subr.mxu0 0.0
  %687 = vmatpush1.msra.mxu0 0.0
  %688 = vmatprep.subr.mxu0 0.0
  %689 = vmatpush1.msra.mxu0 0.0
  %690 = vmatprep.subr.mxu0 0.0
  %691 = vmatpush1.msra.mxu0 0.0
  %692 = vmatprep.subr.mxu0 0.0
  %693 = vmatpush1.msra.mxu0 0.0
  %694 = vmatprep.subr.mxu0 0.0
  %695 = vmatpush1.msra.mxu0 0.0
  %696 = vmatprep.subr.mxu0 0.0
  %697 = vmatpush1.msra.mxu0 0.0
  %698 = vmatprep.subr.mxu0 0.0
  %699 = vmatpush1.msra.mxu0 0.0
  %700 = vmatprep.subr.mxu0 0.0
  %701 = vmatpush1.msra.mxu0 0.0
  %702 = vmatprep.subr.mxu0 0.0
  %703 = vmatpush1.msra.mxu0 0.0
  %704 = vmatprep.subr.mxu0 0.0
  %705 = vmatpush1.msra.mxu0 0.0
  %706 = vmatprep.subr.mxu0 0.0
  %707 = vmatpush1.msra.mxu0 0.0
  %708 = vmatprep.subr.mxu0 0.0
  %709 = vmatpush1.msra.mxu0 0.0
  %710 = vmatprep.subr.mxu0 0.0
  %711 = vmatpush1.msra.mxu0 0.0
  %712 = vmatprep.subr.mxu0 0.0
  %713 = vmatpush1.msra.mxu0 0.0
  %714 = vmatprep.subr.mxu0 0.0
  %715 = vmatpush1.msra.mxu0 0.0
  %716 = vmatprep.subr.mxu0 0.0
  %717 = vmatpush1.msra.mxu0 0.0
  %718 = vmatprep.subr.mxu0 0.0
  %719 = vmatpush1.msra.mxu0 0.0
  %720 = vmatprep.subr.mxu0 0.0
  %721 = vmatpush1.msra.mxu0 0.0
  %722 = vmatprep.subr.mxu0 0.0
  %723 = vmatpush1.msra.mxu0 0.0
  %724 = vmatprep.subr.mxu0 0.0
  %725 = vmatpush1.msra.mxu0 0.0
  %726 = vmatprep.subr.mxu0 0.0
  %727 = vmatpush1.msra.mxu0 0.0
  %728 = vmatprep.subr.mxu0 0.0
  %729 = vmatpush1.msra.mxu0 0.0
  %730 = vmatprep.subr.mxu0 0.0
  %731 = vmatpush1.msra.mxu0 0.0
  %732 = vmatprep.subr.mxu0 0.0
  %733 = vmatpush1.msra.mxu0 0.0
  %734 = vmatprep.subr.mxu0 0.0
  %735 = vmatpush1.msra.mxu0 0.0
  %736 = vmatprep.mubr.f32.mxu0 0.0
  %737 = vmatmul.mubr.f32.gmra.mrb[0].mxu0 %v670
  %v738 = vpop.f32.mrb[0].mxu0
  %v739 = vadd.f32 0.0, %v738
  %v740 = vpop.f32.mrb[0].mxu0
  %741 = vdwg.mxu0
  %v742 = vadd.f32 %v404, %v739
  %v743 = vtanh.pop %v742
  %v744 = vmul.f32 %v743, 0.5
  %v745 = vadd.f32 %v744, 0.5
  %v746 = vmul.f32 %v745, %v660
  %748 = vrot.lane.b32.xlu0 %v743, 32
  %v749 = vpop.permute.xlu0 %748
  %v751 = vmul.f32 %v745, %v749
  %753 = vrot.lane.b32.xlu0 %v751, 32
  %v754 = vpop.permute.xlu0 %753
  %v756 = vadd.f32 %v746, %v754
  %v757 = vtanh.pop %v756
  %759 = vrot.lane.b32.xlu0 %v757, 32
  %v760 = vpop.permute.xlu0 %759
  %v762 = vmul.f32 %v745, %v760
  %764 = vrot.lane.b32.xlu0 %v762, 64
  %v765 = vpop.permute.xlu0 %764
  %v766 = vsel %vm476, %v765, 0
  %768 = vmatprep.subr.mxu0 0.0
  %769 = vmatpush1.msra.mxu0 %v472
  %770 = vmatprep.subr.mxu0 0.0
  %771 = vmatpush1.msra.mxu0 %v473
  %772 = vmatprep.subr.mxu0 0.0
  %773 = vmatpush1.msra.mxu0 %v474
  %774 = vmatprep.subr.mxu0 0.0
  %775 = vmatpush1.msra.mxu0 %v475
  %776 = vmatprep.subr.mxu0 0.0
  %777 = vmatpush1.msra.mxu0 0.0
  %778 = vmatprep.subr.mxu0 0.0
  %779 = vmatpush1.msra.mxu0 0.0
  %780 = vmatprep.subr.mxu0 0.0
  %781 = vmatpush1.msra.mxu0 0.0
  %782 = vmatprep.subr.mxu0 0.0
  %783 = vmatpush1.msra.mxu0 0.0
  %784 = vmatprep.subr.mxu0 0.0
  %785 = vmatpush1.msra.mxu0 0.0
  %786 = vmatprep.subr.mxu0 0.0
  %787 = vmatpush1.msra.mxu0 0.0
  %788 = vmatprep.subr.mxu0 0.0
  %789 = vmatpush1.msra.mxu0 0.0
  %790 = vmatprep.subr.mxu0 0.0
  %791 = vmatpush1.msra.mxu0 0.0
  %792 = vmatprep.subr.mxu0 0.0
  %793 = vmatpush1.msra.mxu0 0.0
  %794 = vmatprep.subr.mxu0 0.0
  %795 = vmatpush1.msra.mxu0 0.0
  %796 = vmatprep.subr.mxu0 0.0
  %797 = vmatpush1.msra.mxu0 0.0
  %798 = vmatprep.subr.mxu0 0.0
  %799 = vmatpush1.msra.mxu0 0.0
  %800 = vmatprep.subr.mxu0 0.0
  %801 = vmatpush1.msra.mxu0 0.0
  %802 = vmatprep.subr.mxu0 0.0
  %803 = vmatpush1.msra.mxu0 0.0
  %804 = vmatprep.subr.mxu0 0.0
  %805 = vmatpush1.msra.mxu0 0.0
  %806 = vmatprep.subr.mxu0 0.0
  %807 = vmatpush1.msra.mxu0 0.0
  %808 = vmatprep.subr.mxu0 0.0
  %809 = vmatpush1.msra.mxu0 0.0
  %810 = vmatprep.subr.mxu0 0.0
  %811 = vmatpush1.msra.mxu0 0.0
  %812 = vmatprep.subr.mxu0 0.0
  %813 = vmatpush1.msra.mxu0 0.0
  %814 = vmatprep.subr.mxu0 0.0
  %815 = vmatpush1.msra.mxu0 0.0
  %816 = vmatprep.subr.mxu0 0.0
  %817 = vmatpush1.msra.mxu0 0.0
  %818 = vmatprep.subr.mxu0 0.0
  %819 = vmatpush1.msra.mxu0 0.0
  %820 = vmatprep.subr.mxu0 0.0
  %821 = vmatpush1.msra.mxu0 0.0
  %822 = vmatprep.subr.mxu0 0.0
  %823 = vmatpush1.msra.mxu0 0.0
  %824 = vmatprep.subr.mxu0 0.0
  %825 = vmatpush1.msra.mxu0 0.0
  %826 = vmatprep.subr.mxu0 0.0
  %827 = vmatpush1.msra.mxu0 0.0
  %828 = vmatprep.subr.mxu0 0.0
  %829 = vmatpush1.msra.mxu0 0.0
  %830 = vmatprep.subr.mxu0 0.0
  %831 = vmatpush1.msra.mxu0 0.0
  %832 = vmatprep.mubr.f32.mxu0 0.0
  %833 = vmatmul.mubr.f32.gmra.mrb[0].mxu0 %v766
  %v834 = vpop.f32.mrb[0].mxu0
  %v835 = vadd.f32 0.0, %v834
  %v836 = vpop.f32.mrb[0].mxu0
  %837 = vdwg.mxu0
  %v838 = vadd.f32 %v409, %v835
  %v839 = vtanh.pop %v838
  %v840 = vmul.f32 %v839, 0.5
  %v841 = vadd.f32 %v840, 0.5
  %v842 = vmul.f32 %v841, %v756
  %844 = vrot.lane.b32.xlu0 %v839, 32
  %v845 = vpop.permute.xlu0 %844
  %v847 = vmul.f32 %v841, %v845
  %849 = vrot.lane.b32.xlu0 %v847, 32
  %v850 = vpop.permute.xlu0 %849
  %v852 = vadd.f32 %v842, %v850
  %v853 = vtanh.pop %v852
  %855 = vrot.lane.b32.xlu0 %v853, 32
  %v856 = vpop.permute.xlu0 %855
  %v858 = vmul.f32 %v841, %v856
  %860 = vrot.lane.b32.xlu0 %v858, 64
  %v861 = vpop.permute.xlu0 %860
  %v862 = vsel %vm476, %v861, 0
  %864 = vmatprep.subr.mxu0 0.0
  %865 = vmatpush1.msra.mxu0 %v472
  %866 = vmatprep.subr.mxu0 0.0
  %867 = vmatpush1.msra.mxu0 %v473
  %868 = vmatprep.subr.mxu0 0.0
  %869 = vmatpush1.msra.mxu0 %v474
  %870 = vmatprep.subr.mxu0 0.0
  %871 = vmatpush1.msra.mxu0 %v475
  %872 = vmatprep.subr.mxu0 0.0
  %873 = vmatpush1.msra.mxu0 0.0
  %874 = vmatprep.subr.mxu0 0.0
  %875 = vmatpush1.msra.mxu0 0.0
  %876 = vmatprep.subr.mxu0 0.0
  %877 = vmatpush1.msra.mxu0 0.0
  %878 = vmatprep.subr.mxu0 0.0
  %879 = vmatpush1.msra.mxu0 0.0
  %880 = vmatprep.subr.mxu0 0.0
  %881 = vmatpush1.msra.mxu0 0.0
  %882 = vmatprep.subr.mxu0 0.0
  %883 = vmatpush1.msra.mxu0 0.0
  %884 = vmatprep.subr.mxu0 0.0
  %885 = vmatpush1.msra.mxu0 0.0
  %886 = vmatprep.subr.mxu0 0.0
  %887 = vmatpush1.msra.mxu0 0.0
  %888 = vmatprep.subr.mxu0 0.0
  %889 = vmatpush1.msra.mxu0 0.0
  %890 = vmatprep.subr.mxu0 0.0
  %891 = vmatpush1.msra.mxu0 0.0
  %892 = vmatprep.subr.mxu0 0.0
  %893 = vmatpush1.msra.mxu0 0.0
  %894 = vmatprep.subr.mxu0 0.0
  %895 = vmatpush1.msra.mxu0 0.0
  %896 = vmatprep.subr.mxu0 0.0
  %897 = vmatpush1.msra.mxu0 0.0
  %898 = vmatprep.subr.mxu0 0.0
  %899 = vmatpush1.msra.mxu0 0.0
  %900 = vmatprep.subr.mxu0 0.0
  %901 = vmatpush1.msra.mxu0 0.0
  %902 = vmatprep.subr.mxu0 0.0
  %903 = vmatpush1.msra.mxu0 0.0
  %904 = vmatprep.subr.mxu0 0.0
  %905 = vmatpush1.msra.mxu0 0.0
  %906 = vmatprep.subr.mxu0 0.0
  %907 = vmatpush1.msra.mxu0 0.0
  %908 = vmatprep.subr.mxu0 0.0
  %909 = vmatpush1.msra.mxu0 0.0
  %910 = vmatprep.subr.mxu0 0.0
  %911 = vmatpush1.msra.mxu0 0.0
  %912 = vmatprep.subr.mxu0 0.0
  %913 = vmatpush1.msra.mxu0 0.0
  %914 = vmatprep.subr.mxu0 0.0
  %915 = vmatpush1.msra.mxu0 0.0
  %916 = vmatprep.subr.mxu0 0.0
  %917 = vmatpush1.msra.mxu0 0.0
  %918 = vmatprep.subr.mxu0 0.0
  %919 = vmatpush1.msra.mxu0 0.0
  %920 = vmatprep.subr.mxu0 0.0
  %921 = vmatpush1.msra.mxu0 0.0
  %922 = vmatprep.subr.mxu0 0.0
  %923 = vmatpush1.msra.mxu0 0.0
  %924 = vmatprep.subr.mxu0 0.0
  %925 = vmatpush1.msra.mxu0 0.0
  %926 = vmatprep.subr.mxu0 0.0
  %927 = vmatpush1.msra.mxu0 0.0
  %928 = vmatprep.mubr.f32.mxu0 0.0
  %929 = vmatmul.mubr.f32.gmra.mrb[0].mxu0 %v862
  %v930 = vpop.f32.mrb[0].mxu0
  %v931 = vadd.f32 0.0, %v930
  %v932 = vpop.f32.mrb[0].mxu0
  %933 = vdwg.mxu0
  %v934 = vadd.f32 %v414, %v931
  %v935 = vtanh.pop %v934
  %v936 = vmul.f32 %v935, 0.5
  %v937 = vadd.f32 %v936, 0.5
  %v938 = vmul.f32 %v937, %v852
  %940 = vrot.lane.b32.xlu0 %v935, 32
  %v941 = vpop.permute.xlu0 %940
  %v943 = vmul.f32 %v937, %v941
  %945 = vrot.lane.b32.xlu0 %v943, 32
  %v946 = vpop.permute.xlu0 %945
  %v948 = vadd.f32 %v938, %v946
  %v949 = vtanh.pop %v948
  %951 = vrot.lane.b32.xlu0 %v949, 32
  %v952 = vpop.permute.xlu0 %951
  %v954 = vmul.f32 %v937, %v952
  %956 = vrot.lane.b32.xlu0 %v954, 64
  %v957 = vpop.permute.xlu0 %956
  %v958 = vsel %vm476, %v957, 0
  %960 = vmatprep.subr.mxu0 0.0
  %961 = vmatpush1.msra.mxu0 %v472
  %962 = vmatprep.subr.mxu0 0.0
  %963 = vmatpush1.msra.mxu0 %v473
  %964 = vmatprep.subr.mxu0 0.0
  %965 = vmatpush1.msra.mxu0 %v474
  %966 = vmatprep.subr.mxu0 0.0
  %967 = vmatpush1.msra.mxu0 %v475
  %968 = vmatprep.subr.mxu0 0.0
  %969 = vmatpush1.msra.mxu0 0.0
  %970 = vmatprep.subr.mxu0 0.0
  %971 = vmatpush1.msra.mxu0 0.0
  %972 = vmatprep.subr.mxu0 0.0
  %973 = vmatpush1.msra.mxu0 0.0
  %974 = vmatprep.subr.mxu0 0.0
  %975 = vmatpush1.msra.mxu0 0.0
  %976 = vmatprep.subr.mxu0 0.0
  %977 = vmatpush1.msra.mxu0 0.0
  %978 = vmatprep.subr.mxu0 0.0
  %979 = vmatpush1.msra.mxu0 0.0
  %980 = vmatprep.subr.mxu0 0.0
  %981 = vmatpush1.msra.mxu0 0.0
  %982 = vmatprep.subr.mxu0 0.0
  %983 = vmatpush1.msra.mxu0 0.0
  %984 = vmatprep.subr.mxu0 0.0
  %985 = vmatpush1.msra.mxu0 0.0
  %986 = vmatprep.subr.mxu0 0.0
  %987 = vmatpush1.msra.mxu0 0.0
  %988 = vmatprep.subr.mxu0 0.0
  %989 = vmatpush1.msra.mxu0 0.0
  %990 = vmatprep.subr.mxu0 0.0
  %991 = vmatpush1.msra.mxu0 0.0
  %992 = vmatprep.subr.mxu0 0.0
  %993 = vmatpush1.msra.mxu0 0.0
  %994 = vmatprep.subr.mxu0 0.0
  %995 = vmatpush1.msra.mxu0 0.0
  %996 = vmatprep.subr.mxu0 0.0
  %997 = vmatpush1.msra.mxu0 0.0
  %998 = vmatprep.subr.mxu0 0.0
  %999 = vmatpush1.msra.mxu0 0.0
  %1000 = vmatprep.subr.mxu0 0.0
  %1001 = vmatpush1.msra.mxu0 0.0
  %1002 = vmatprep.subr.mxu0 0.0
  %1003 = vmatpush1.msra.mxu0 0.0
  %1004 = vmatprep.subr.mxu0 0.0
  %1005 = vmatpush1.msra.mxu0 0.0
  %1006 = vmatprep.subr.mxu0 0.0
  %1007 = vmatpush1.msra.mxu0 0.0
  %1008 = vmatprep.subr.mxu0 0.0
  %1009 = vmatpush1.msra.mxu0 0.0
  %1010 = vmatprep.subr.mxu0 0.0
  %1011 = vmatpush1.msra.mxu0 0.0
  %1012 = vmatprep.subr.mxu0 0.0
  %1013 = vmatpush1.msra.mxu0 0.0
  %1014 = vmatprep.subr.mxu0 0.0
  %1015 = vmatpush1.msra.mxu0 0.0
  %1016 = vmatprep.subr.mxu0 0.0
  %1017 = vmatpush1.msra.mxu0 0.0
  %1018 = vmatprep.subr.mxu0 0.0
  %1019 = vmatpush1.msra.mxu0 0.0
  %1020 = vmatprep.subr.mxu0 0.0
  %1021 = vmatpush1.msra.mxu0 0.0
  %1022 = vmatprep.subr.mxu0 0.0
  %1023 = vmatpush1.msra.mxu0 0.0
  %1024 = vmatprep.mubr.f32.mxu0 0.0
  %1025 = vmatmul.mubr.f32.gmra.mrb[0].mxu0 %v958
  %v1026 = vpop.f32.mrb[0].mxu0
  %v1027 = vadd.f32 0.0, %v1026
  %v1028 = vpop.f32.mrb[0].mxu0
  %1029 = vdwg.mxu0
  %v1030 = vadd.f32 %v419, %v1027
  %v1031 = vtanh.pop %v1030
  %v1032 = vmul.f32 %v1031, 0.5
  %v1033 = vadd.f32 %v1032, 0.5
  %v1034 = vmul.f32 %v1033, %v948
  %1036 = vrot.lane.b32.xlu0 %v1031, 32
  %v1037 = vpop.permute.xlu0 %1036
  %v1039 = vmul.f32 %v1033, %v1037
  %1041 = vrot.lane.b32.xlu0 %v1039, 32
  %v1042 = vpop.permute.xlu0 %1041
  %v1044 = vadd.f32 %v1034, %v1042
  %v1045 = vtanh.pop %v1044
  %1047 = vrot.lane.b32.xlu0 %v1045, 32
  %v1048 = vpop.permute.xlu0 %1047
  %v1050 = vmul.f32 %v1033, %v1048
  %1052 = vrot.lane.b32.xlu0 %v1050, 64
  %v1053 = vpop.permute.xlu0 %1052
  %v1054 = vsel %vm476, %v1053, 0
  %1056 = vmatprep.subr.mxu0 0.0
  %1057 = vmatpush1.msra.mxu0 %v472
  %1058 = vmatprep.subr.mxu0 0.0
  %1059 = vmatpush1.msra.mxu0 %v473
  %1060 = vmatprep.subr.mxu0 0.0
  %1061 = vmatpush1.msra.mxu0 %v474
  %1062 = vmatprep.subr.mxu0 0.0
  %1063 = vmatpush1.msra.mxu0 %v475
  %1064 = vmatprep.subr.mxu0 0.0
  %1065 = vmatpush1.msra.mxu0 0.0
  %1066 = vmatprep.subr.mxu0 0.0
  %1067 = vmatpush1.msra.mxu0 0.0
  %1068 = vmatprep.subr.mxu0 0.0
  %1069 = vmatpush1.msra.mxu0 0.0
  %1070 = vmatprep.subr.mxu0 0.0
  %1071 = vmatpush1.msra.mxu0 0.0
  %1072 = vmatprep.subr.mxu0 0.0
  %1073 = vmatpush1.msra.mxu0 0.0
  %1074 = vmatprep.subr.mxu0 0.0
  %1075 = vmatpush1.msra.mxu0 0.0
  %1076 = vmatprep.subr.mxu0 0.0
  %1077 = vmatpush1.msra.mxu0 0.0
  %1078 = vmatprep.subr.mxu0 0.0
  %1079 = vmatpush1.msra.mxu0 0.0
  %1080 = vmatprep.subr.mxu0 0.0
  %1081 = vmatpush1.msra.mxu0 0.0
  %1082 = vmatprep.subr.mxu0 0.0
  %1083 = vmatpush1.msra.mxu0 0.0
  %1084 = vmatprep.subr.mxu0 0.0
  %1085 = vmatpush1.msra.mxu0 0.0
  %1086 = vmatprep.subr.mxu0 0.0
  %1087 = vmatpush1.msra.mxu0 0.0
  %1088 = vmatprep.subr.mxu0 0.0
  %1089 = vmatpush1.msra.mxu0 0.0
  %1090 = vmatprep.subr.mxu0 0.0
  %1091 = vmatpush1.msra.mxu0 0.0
  %1092 = vmatprep.subr.mxu0 0.0
  %1093 = vmatpush1.msra.mxu0 0.0
  %1094 = vmatprep.subr.mxu0 0.0
  %1095 = vmatpush1.msra.mxu0 0.0
  %1096 = vmatprep.subr.mxu0 0.0
  %1097 = vmatpush1.msra.mxu0 0.0
  %1098 = vmatprep.subr.mxu0 0.0
  %1099 = vmatpush1.msra.mxu0 0.0
  %1100 = vmatprep.subr.mxu0 0.0
  %1101 = vmatpush1.msra.mxu0 0.0
  %1102 = vmatprep.subr.mxu0 0.0
  %1103 = vmatpush1.msra.mxu0 0.0
  %1104 = vmatprep.subr.mxu0 0.0
  %1105 = vmatpush1.msra.mxu0 0.0
  %1106 = vmatprep.subr.mxu0 0.0
  %1107 = vmatpush1.msra.mxu0 0.0
  %1108 = vmatprep.subr.mxu0 0.0
  %1109 = vmatpush1.msra.mxu0 0.0
  %1110 = vmatprep.subr.mxu0 0.0
  %1111 = vmatpush1.msra.mxu0 0.0
  %1112 = vmatprep.subr.mxu0 0.0
  %1113 = vmatpush1.msra.mxu0 0.0
  %1114 = vmatprep.subr.mxu0 0.0
  %1115 = vmatpush1.msra.mxu0 0.0
  %1116 = vmatprep.subr.mxu0 0.0
  %1117 = vmatpush1.msra.mxu0 0.0
  %1118 = vmatprep.subr.mxu0 0.0
  %1119 = vmatpush1.msra.mxu0 0.0
  %1120 = vmatprep.mubr.f32.mxu0 0.0
  %1121 = vmatmul.mubr.f32.gmra.mrb[0].mxu0 %v1054
  %v1122 = vpop.f32.mrb[0].mxu0
  %v1123 = vadd.f32 0.0, %v1122
  %v1124 = vpop.f32.mrb[0].mxu0
  %1125 = vdwg.mxu0
  %v1126 = vadd.f32 %v424, %v1123
  %v1127 = vtanh.pop %v1126
  %v1128 = vmul.f32 %v1127, 0.5
  %v1129 = vadd.f32 %v1128, 0.5
  %v1130 = vmul.f32 %v1129, %v1044
  %1132 = vrot.lane.b32.xlu0 %v1127, 32
  %v1133 = vpop.permute.xlu0 %1132
  %v1135 = vmul.f32 %v1129, %v1133
  %1137 = vrot.lane.b32.xlu0 %v1135, 32
  %v1138 = vpop.permute.xlu0 %1137
  %v1140 = vadd.f32 %v1130, %v1138
  %v1141 = vtanh.pop %v1140
  %1143 = vrot.lane.b32.xlu0 %v1141, 32
  %v1144 = vpop.permute.xlu0 %1143
  %v1146 = vmul.f32 %v1129, %v1144
  %1148 = vrot.lane.b32.xlu0 %v1146, 64
  %v1149 = vpop.permute.xlu0 %1148
  %v1150 = vsel %vm476, %v1149, 0
  %1152 = vmatprep.subr.mxu0 0.0
  %1153 = vmatpush1.msra.mxu0 %v472
  %1154 = vmatprep.subr.mxu0 0.0
  %1155 = vmatpush1.msra.mxu0 %v473
  %1156 = vmatprep.subr.mxu0 0.0
  %1157 = vmatpush1.msra.mxu0 %v474
  %1158 = vmatprep.subr.mxu0 0.0
  %1159 = vmatpush1.msra.mxu0 %v475
  %1160 = vmatprep.subr.mxu0 0.0
  %1161 = vmatpush1.msra.mxu0 0.0
  %1162 = vmatprep.subr.mxu0 0.0
  %1163 = vmatpush1.msra.mxu0 0.0
  %1164 = vmatprep.subr.mxu0 0.0
  %1165 = vmatpush1.msra.mxu0 0.0
  %1166 = vmatprep.subr.mxu0 0.0
  %1167 = vmatpush1.msra.mxu0 0.0
  %1168 = vmatprep.subr.mxu0 0.0
  %1169 = vmatpush1.msra.mxu0 0.0
  %1170 = vmatprep.subr.mxu0 0.0
  %1171 = vmatpush1.msra.mxu0 0.0
  %1172 = vmatprep.subr.mxu0 0.0
  %1173 = vmatpush1.msra.mxu0 0.0
  %1174 = vmatprep.subr.mxu0 0.0
  %1175 = vmatpush1.msra.mxu0 0.0
  %1176 = vmatprep.subr.mxu0 0.0
  %1177 = vmatpush1.msra.mxu0 0.0
  %1178 = vmatprep.subr.mxu0 0.0
  %1179 = vmatpush1.msra.mxu0 0.0
  %1180 = vmatprep.subr.mxu0 0.0
  %1181 = vmatpush1.msra.mxu0 0.0
  %1182 = vmatprep.subr.mxu0 0.0
  %1183 = vmatpush1.msra.mxu0 0.0
  %1184 = vmatprep.subr.mxu0 0.0
  %1185 = vmatpush1.msra.mxu0 0.0
  %1186 = vmatprep.subr.mxu0 0.0
  %1187 = vmatpush1.msra.mxu0 0.0
  %1188 = vmatprep.subr.mxu0 0.0
  %1189 = vmatpush1.msra.mxu0 0.0
  %1190 = vmatprep.subr.mxu0 0.0
  %1191 = vmatpush1.msra.mxu0 0.0
  %1192 = vmatprep.subr.mxu0 0.0
  %1193 = vmatpush1.msra.mxu0 0.0
  %1194 = vmatprep.subr.mxu0 0.0
  %1195 = vmatpush1.msra.mxu0 0.0
  %1196 = vmatprep.subr.mxu0 0.0
  %1197 = vmatpush1.msra.mxu0 0.0
  %1198 = vmatprep.subr.mxu0 0.0
  %1199 = vmatpush1.msra.mxu0 0.0
  %1200 = vmatprep.subr.mxu0 0.0
  %1201 = vmatpush1.msra.mxu0 0.0
  %1202 = vmatprep.subr.mxu0 0.0
  %1203 = vmatpush1.msra.mxu0 0.0
  %1204 = vmatprep.subr.mxu0 0.0
  %1205 = vmatpush1.msra.mxu0 0.0
  %1206 = vmatprep.subr.mxu0 0.0
  %1207 = vmatpush1.msra.mxu0 0.0
  %1208 = vmatprep.subr.mxu0 0.0
  %1209 = vmatpush1.msra.mxu0 0.0
  %1210 = vmatprep.subr.mxu0 0.0
  %1211 = vmatpush1.msra.mxu0 0.0
  %1212 = vmatprep.subr.mxu0 0.0
  %1213 = vmatpush1.msra.mxu0 0.0
  %1214 = vmatprep.subr.mxu0 0.0
  %1215 = vmatpush1.msra.mxu0 0.0
  %1216 = vmatprep.mubr.f32.mxu0 0.0
  %1217 = vmatmul.mubr.f32.gmra.mrb[0].mxu0 %v1150
  %v1218 = vpop.f32.mrb[0].mxu0
  %v1219 = vadd.f32 0.0, %v1218
  %v1220 = vpop.f32.mrb[0].mxu0
  %1221 = vdwg.mxu0
  %v1222 = vadd.f32 %v429, %v1219
  %v1223 = vtanh.pop %v1222
  %v1224 = vmul.f32 %v1223, 0.5
  %v1225 = vadd.f32 %v1224, 0.5
  %v1226 = vmul.f32 %v1225, %v1140
  %1228 = vrot.lane.b32.xlu0 %v1223, 32
  %v1229 = vpop.permute.xlu0 %1228
  %v1231 = vmul.f32 %v1225, %v1229
  %1233 = vrot.lane.b32.xlu0 %v1231, 32
  %v1234 = vpop.permute.xlu0 %1233
  %v1236 = vadd.f32 %v1226, %v1234
  %v1237 = vtanh.pop %v1236
  %1239 = vrot.lane.b32.xlu0 %v1237, 32
  %v1240 = vpop.permute.xlu0 %1239
  %v1242 = vmul.f32 %v1225, %v1240
  %1244 = vrot.lane.b32.xlu0 %v1242, 64
  %v1245 = vpop.permute.xlu0 %1244
  %v1246 = vsel %vm476, %v1245, 0
  %1248 = vmatprep.subr.mxu0 0.0
  %1249 = vmatpush1.msra.mxu0 %v472
  %1250 = vmatprep.subr.mxu0 0.0
  %1251 = vmatpush1.msra.mxu0 %v473
  %1252 = vmatprep.subr.mxu0 0.0
  %1253 = vmatpush1.msra.mxu0 %v474
  %1254 = vmatprep.subr.mxu0 0.0
  %1255 = vmatpush1.msra.mxu0 %v475
  %1256 = vmatprep.subr.mxu0 0.0
  %1257 = vmatpush1.msra.mxu0 0.0
  %1258 = vmatprep.subr.mxu0 0.0
  %1259 = vmatpush1.msra.mxu0 0.0
  %1260 = vmatprep.subr.mxu0 0.0
  %1261 = vmatpush1.msra.mxu0 0.0
  %1262 = vmatprep.subr.mxu0 0.0
  %1263 = vmatpush1.msra.mxu0 0.0
  %1264 = vmatprep.subr.mxu0 0.0
  %1265 = vmatpush1.msra.mxu0 0.0
  %1266 = vmatprep.subr.mxu0 0.0
  %1267 = vmatpush1.msra.mxu0 0.0
  %1268 = vmatprep.subr.mxu0 0.0
  %1269 = vmatpush1.msra.mxu0 0.0
  %1270 = vmatprep.subr.mxu0 0.0
  %1271 = vmatpush1.msra.mxu0 0.0
  %1272 = vmatprep.subr.mxu0 0.0
  %1273 = vmatpush1.msra.mxu0 0.0
  %1274 = vmatprep.subr.mxu0 0.0
  %1275 = vmatpush1.msra.mxu0 0.0
  %1276 = vmatprep.subr.mxu0 0.0
  %1277 = vmatpush1.msra.mxu0 0.0
  %1278 = vmatprep.subr.mxu0 0.0
  %1279 = vmatpush1.msra.mxu0 0.0
  %1280 = vmatprep.subr.mxu0 0.0
  %1281 = vmatpush1.msra.mxu0 0.0
  %1282 = vmatprep.subr.mxu0 0.0
  %1283 = vmatpush1.msra.mxu0 0.0
  %1284 = vmatprep.subr.mxu0 0.0
  %1285 = vmatpush1.msra.mxu0 0.0
  %1286 = vmatprep.subr.mxu0 0.0
  %1287 = vmatpush1.msra.mxu0 0.0
  %1288 = vmatprep.subr.mxu0 0.0
  %1289 = vmatpush1.msra.mxu0 0.0
  %1290 = vmatprep.subr.mxu0 0.0
  %1291 = vmatpush1.msra.mxu0 0.0
  %1292 = vmatprep.subr.mxu0 0.0
  %1293 = vmatpush1.msra.mxu0 0.0
  %1294 = vmatprep.subr.mxu0 0.0
  %1295 = vmatpush1.msra.mxu0 0.0
  %1296 = vmatprep.subr.mxu0 0.0
  %1297 = vmatpush1.msra.mxu0 0.0
  %1298 = vmatprep.subr.mxu0 0.0
  %1299 = vmatpush1.msra.mxu0 0.0
  %1300 = vmatprep.subr.mxu0 0.0
  %1301 = vmatpush1.msra.mxu0 0.0
  %1302 = vmatprep.subr.mxu0 0.0
  %1303 = vmatpush1.msra.mxu0 0.0
  %1304 = vmatprep.subr.mxu0 0.0
  %1305 = vmatpush1.msra.mxu0 0.0
  %1306 = vmatprep.subr.mxu0 0.0
  %1307 = vmatpush1.msra.mxu0 0.0
  %1308 = vmatprep.subr.mxu0 0.0
  %1309 = vmatpush1.msra.mxu0 0.0
  %1310 = vmatprep.subr.mxu0 0.0
  %1311 = vmatpush1.msra.mxu0 0.0
  %1312 = vmatprep.mubr.f32.mxu0 0.0
  %1313 = vmatmul.mubr.f32.gmra.mrb[0].mxu0 %v1246
  %v1314 = vpop.f32.mrb[0].mxu0
  %v1315 = vadd.f32 0.0, %v1314
  %v1316 = vpop.f32.mrb[0].mxu0
  %1317 = vdwg.mxu0
  %v1318 = vadd.f32 %v434, %v1315
  %v1319 = vtanh.pop %v1318
  %v1320 = vmul.f32 %v1319, 0.5
  %v1321 = vadd.f32 %v1320, 0.5
  %v1322 = vmul.f32 %v1321, %v1236
  %1324 = vrot.lane.b32.xlu0 %v1319, 32
  %v1325 = vpop.permute.xlu0 %1324
  %v1327 = vmul.f32 %v1321, %v1325
  %1329 = vrot.lane.b32.xlu0 %v1327, 32
  %v1330 = vpop.permute.xlu0 %1329
  %v1332 = vadd.f32 %v1322, %v1330
  %v1333 = vtanh.pop %v1332
  %1335 = vrot.lane.b32.xlu0 %v1333, 32
  %v1336 = vpop.permute.xlu0 %1335
  %v1338 = vmul.f32 %v1321, %v1336
  %1340 = vrot.lane.b32.xlu0 %v1338, 64
  %v1341 = vpop.permute.xlu0 %1340
  %v1342 = vsel %vm476, %v1341, 0
  %1344 = vmatprep.subr.mxu0 0.0
  %1345 = vmatpush1.msra.mxu0 %v472
  %1346 = vmatprep.subr.mxu0 0.0
  %1347 = vmatpush1.msra.mxu0 %v473
  %1348 = vmatprep.subr.mxu0 0.0
  %1349 = vmatpush1.msra.mxu0 %v474
  %1350 = vmatprep.subr.mxu0 0.0
  %1351 = vmatpush1.msra.mxu0 %v475
  %1352 = vmatprep.subr.mxu0 0.0
  %1353 = vmatpush1.msra.mxu0 0.0
  %1354 = vmatprep.subr.mxu0 0.0
  %1355 = vmatpush1.msra.mxu0 0.0
  %1356 = vmatprep.subr.mxu0 0.0
  %1357 = vmatpush1.msra.mxu0 0.0
  %1358 = vmatprep.subr.mxu0 0.0
  %1359 = vmatpush1.msra.mxu0 0.0
  %1360 = vmatprep.subr.mxu0 0.0
  %1361 = vmatpush1.msra.mxu0 0.0
  %1362 = vmatprep.subr.mxu0 0.0
  %1363 = vmatpush1.msra.mxu0 0.0
  %1364 = vmatprep.subr.mxu0 0.0
  %1365 = vmatpush1.msra.mxu0 0.0
  %1366 = vmatprep.subr.mxu0 0.0
  %1367 = vmatpush1.msra.mxu0 0.0
  %1368 = vmatprep.subr.mxu0 0.0
  %1369 = vmatpush1.msra.mxu0 0.0
  %1370 = vmatprep.subr.mxu0 0.0
  %1371 = vmatpush1.msra.mxu0 0.0
  %1372 = vmatprep.subr.mxu0 0.0
  %1373 = vmatpush1.msra.mxu0 0.0
  %1374 = vmatprep.subr.mxu0 0.0
  %1375 = vmatpush1.msra.mxu0 0.0
  %1376 = vmatprep.subr.mxu0 0.0
  %1377 = vmatpush1.msra.mxu0 0.0
  %1378 = vmatprep.subr.mxu0 0.0
  %1379 = vmatpush1.msra.mxu0 0.0
  %1380 = vmatprep.subr.mxu0 0.0
  %1381 = vmatpush1.msra.mxu0 0.0
  %1382 = vmatprep.subr.mxu0 0.0
  %1383 = vmatpush1.msra.mxu0 0.0
  %1384 = vmatprep.subr.mxu0 0.0
  %1385 = vmatpush1.msra.mxu0 0.0
  %1386 = vmatprep.subr.mxu0 0.0
  %1387 = vmatpush1.msra.mxu0 0.0
  %1388 = vmatprep.subr.mxu0 0.0
  %1389 = vmatpush1.msra.mxu0 0.0
  %1390 = vmatprep.subr.mxu0 0.0
  %1391 = vmatpush1.msra.mxu0 0.0
  %1392 = vmatprep.subr.mxu0 0.0
  %1393 = vmatpush1.msra.mxu0 0.0
  %1394 = vmatprep.subr.mxu0 0.0
  %1395 = vmatpush1.msra.mxu0 0.0
  %1396 = vmatprep.subr.mxu0 0.0
  %1397 = vmatpush1.msra.mxu0 0.0
  %1398 = vmatprep.subr.mxu0 0.0
  %1399 = vmatpush1.msra.mxu0 0.0
  %1400 = vmatprep.subr.mxu0 0.0
  %1401 = vmatpush1.msra.mxu0 0.0
  %1402 = vmatprep.subr.mxu0 0.0
  %1403 = vmatpush1.msra.mxu0 0.0
  %1404 = vmatprep.subr.mxu0 0.0
  %1405 = vmatpush1.msra.mxu0 0.0
  %1406 = vmatprep.subr.mxu0 0.0
  %1407 = vmatpush1.msra.mxu0 0.0
  %1408 = vmatprep.mubr.f32.mxu0 0.0
  %1409 = vmatmul.mubr.f32.gmra.mrb[0].mxu0 %v1342
  %v1410 = vpop.f32.mrb[0].mxu0
  %v1411 = vadd.f32 0.0, %v1410
  %v1412 = vpop.f32.mrb[0].mxu0
  %1413 = vdwg.mxu0
  %v1414 = vadd.f32 %v439, %v1411
  %v1415 = vtanh.pop %v1414
  %v1416 = vmul.f32 %v1415, 0.5
  %v1417 = vadd.f32 %v1416, 0.5
  %v1418 = vmul.f32 %v1417, %v1332
  %1420 = vrot.lane.b32.xlu0 %v1415, 32
  %v1421 = vpop.permute.xlu0 %1420
  %v1423 = vmul.f32 %v1417, %v1421
  %1425 = vrot.lane.b32.xlu0 %v1423, 32
  %v1426 = vpop.permute.xlu0 %1425
  %v1428 = vadd.f32 %v1418, %v1426
  %v1429 = vtanh.pop %v1428
  %1431 = vrot.lane.b32.xlu0 %v1429, 32
  %v1432 = vpop.permute.xlu0 %1431
  %v1434 = vmul.f32 %v1417, %v1432
  %1436 = vrot.lane.b32.xlu0 %v1434, 64
  %v1437 = vpop.permute.xlu0 %1436
  %v1438 = vsel %vm476, %v1437, 0
  %1440 = vmatprep.subr.mxu0 0.0
  %1441 = vmatpush1.msra.mxu0 %v472
  %1442 = vmatprep.subr.mxu0 0.0
  %1443 = vmatpush1.msra.mxu0 %v473
  %1444 = vmatprep.subr.mxu0 0.0
  %1445 = vmatpush1.msra.mxu0 %v474
  %1446 = vmatprep.subr.mxu0 0.0
  %1447 = vmatpush1.msra.mxu0 %v475
  %1448 = vmatprep.subr.mxu0 0.0
  %1449 = vmatpush1.msra.mxu0 0.0
  %1450 = vmatprep.subr.mxu0 0.0
  %1451 = vmatpush1.msra.mxu0 0.0
  %1452 = vmatprep.subr.mxu0 0.0
  %1453 = vmatpush1.msra.mxu0 0.0
  %1454 = vmatprep.subr.mxu0 0.0
  %1455 = vmatpush1.msra.mxu0 0.0
  %1456 = vmatprep.subr.mxu0 0.0
  %1457 = vmatpush1.msra.mxu0 0.0
  %1458 = vmatprep.subr.mxu0 0.0
  %1459 = vmatpush1.msra.mxu0 0.0
  %1460 = vmatprep.subr.mxu0 0.0
  %1461 = vmatpush1.msra.mxu0 0.0
  %1462 = vmatprep.subr.mxu0 0.0
  %1463 = vmatpush1.msra.mxu0 0.0
  %1464 = vmatprep.subr.mxu0 0.0
  %1465 = vmatpush1.msra.mxu0 0.0
  %1466 = vmatprep.subr.mxu0 0.0
  %1467 = vmatpush1.msra.mxu0 0.0
  %1468 = vmatprep.subr.mxu0 0.0
  %1469 = vmatpush1.msra.mxu0 0.0
  %1470 = vmatprep.subr.mxu0 0.0
  %1471 = vmatpush1.msra.mxu0 0.0
  %1472 = vmatprep.subr.mxu0 0.0
  %1473 = vmatpush1.msra.mxu0 0.0
  %1474 = vmatprep.subr.mxu0 0.0
  %1475 = vmatpush1.msra.mxu0 0.0
  %1476 = vmatprep.subr.mxu0 0.0
  %1477 = vmatpush1.msra.mxu0 0.0
  %1478 = vmatprep.subr.mxu0 0.0
  %1479 = vmatpush1.msra.mxu0 0.0
  %1480 = vmatprep.subr.mxu0 0.0
  %1481 = vmatpush1.msra.mxu0 0.0
  %1482 = vmatprep.subr.mxu0 0.0
  %1483 = vmatpush1.msra.mxu0 0.0
  %1484 = vmatprep.subr.mxu0 0.0
  %1485 = vmatpush1.msra.mxu0 0.0
  %1486 = vmatprep.subr.mxu0 0.0
  %1487 = vmatpush1.msra.mxu0 0.0
  %1488 = vmatprep.subr.mxu0 0.0
  %1489 = vmatpush1.msra.mxu0 0.0
  %1490 = vmatprep.subr.mxu0 0.0
  %1491 = vmatpush1.msra.mxu0 0.0
  %1492 = vmatprep.subr.mxu0 0.0
  %1493 = vmatpush1.msra.mxu0 0.0
  %1494 = vmatprep.subr.mxu0 0.0
  %1495 = vmatpush1.msra.mxu0 0.0
  %1496 = vmatprep.subr.mxu0 0.0
  %1497 = vmatpush1.msra.mxu0 0.0
  %1498 = vmatprep.subr.mxu0 0.0
  %1499 = vmatpush1.msra.mxu0 0.0
  %1500 = vmatprep.subr.mxu0 0.0
  %1501 = vmatpush1.msra.mxu0 0.0
  %1502 = vmatprep.subr.mxu0 0.0
  %1503 = vmatpush1.msra.mxu0 0.0
  %1504 = vmatprep.mubr.f32.mxu0 0.0
  %1505 = vmatmul.mubr.f32.gmra.mrb[0].mxu0 %v1438
  %v1506 = vpop.f32.mrb[0].mxu0
  %v1507 = vadd.f32 0.0, %v1506
  %v1508 = vpop.f32.mrb[0].mxu0
  %1509 = vdwg.mxu0
  %v1510 = vadd.f32 %v444, %v1507
  %v1511 = vtanh.pop %v1510
  %v1512 = vmul.f32 %v1511, 0.5
  %v1513 = vadd.f32 %v1512, 0.5
  %v1514 = vmul.f32 %v1513, %v1428
  %1516 = vrot.lane.b32.xlu0 %v1511, 32
  %v1517 = vpop.permute.xlu0 %1516
  %v1519 = vmul.f32 %v1513, %v1517
  %1521 = vrot.lane.b32.xlu0 %v1519, 32
  %v1522 = vpop.permute.xlu0 %1521
  %v1524 = vadd.f32 %v1514, %v1522
  %v1525 = vtanh.pop %v1524
  %1527 = vrot.lane.b32.xlu0 %v1525, 32
  %v1528 = vpop.permute.xlu0 %1527
  %v1530 = vmul.f32 %v1513, %v1528
  %1532 = vrot.lane.b32.xlu0 %v1530, 64
  %v1533 = vpop.permute.xlu0 %1532
  %v1534 = vsel %vm476, %v1533, 0
  %1536 = vmatprep.subr.mxu0 0.0
  %1537 = vmatpush1.msra.mxu0 %v472
  %1538 = vmatprep.subr.mxu0 0.0
  %1539 = vmatpush1.msra.mxu0 %v473
  %1540 = vmatprep.subr.mxu0 0.0
  %1541 = vmatpush1.msra.mxu0 %v474
  %1542 = vmatprep.subr.mxu0 0.0
  %1543 = vmatpush1.msra.mxu0 %v475
  %1544 = vmatprep.subr.mxu0 0.0
  %1545 = vmatpush1.msra.mxu0 0.0
  %1546 = vmatprep.subr.mxu0 0.0
  %1547 = vmatpush1.msra.mxu0 0.0
  %1548 = vmatprep.subr.mxu0 0.0
  %1549 = vmatpush1.msra.mxu0 0.0
  %1550 = vmatprep.subr.mxu0 0.0
  %1551 = vmatpush1.msra.mxu0 0.0
  %1552 = vmatprep.subr.mxu0 0.0
  %1553 = vmatpush1.msra.mxu0 0.0
  %1554 = vmatprep.subr.mxu0 0.0
  %1555 = vmatpush1.msra.mxu0 0.0
  %1556 = vmatprep.subr.mxu0 0.0
  %1557 = vmatpush1.msra.mxu0 0.0
  %1558 = vmatprep.subr.mxu0 0.0
  %1559 = vmatpush1.msra.mxu0 0.0
  %1560 = vmatprep.subr.mxu0 0.0
  %1561 = vmatpush1.msra.mxu0 0.0
  %1562 = vmatprep.subr.mxu0 0.0
  %1563 = vmatpush1.msra.mxu0 0.0
  %1564 = vmatprep.subr.mxu0 0.0
  %1565 = vmatpush1.msra.mxu0 0.0
  %1566 = vmatprep.subr.mxu0 0.0
  %1567 = vmatpush1.msra.mxu0 0.0
  %1568 = vmatprep.subr.mxu0 0.0
  %1569 = vmatpush1.msra.mxu0 0.0
  %1570 = vmatprep.subr.mxu0 0.0
  %1571 = vmatpush1.msra.mxu0 0.0
  %1572 = vmatprep.subr.mxu0 0.0
  %1573 = vmatpush1.msra.mxu0 0.0
  %1574 = vmatprep.subr.mxu0 0.0
  %1575 = vmatpush1.msra.mxu0 0.0
  %1576 = vmatprep.subr.mxu0 0.0
  %1577 = vmatpush1.msra.mxu0 0.0
  %1578 = vmatprep.subr.mxu0 0.0
  %1579 = vmatpush1.msra.mxu0 0.0
  %1580 = vmatprep.subr.mxu0 0.0
  %1581 = vmatpush1.msra.mxu0 0.0
  %1582 = vmatprep.subr.mxu0 0.0
  %1583 = vmatpush1.msra.mxu0 0.0
  %1584 = vmatprep.subr.mxu0 0.0
  %1585 = vmatpush1.msra.mxu0 0.0
  %1586 = vmatprep.subr.mxu0 0.0
  %1587 = vmatpush1.msra.mxu0 0.0
  %1588 = vmatprep.subr.mxu0 0.0
  %1589 = vmatpush1.msra.mxu0 0.0
  %1590 = vmatprep.subr.mxu0 0.0
  %1591 = vmatpush1.msra.mxu0 0.0
  %1592 = vmatprep.subr.mxu0 0.0
  %1593 = vmatpush1.msra.mxu0 0.0
  %1594 = vmatprep.subr.mxu0 0.0
  %1595 = vmatpush1.msra.mxu0 0.0
  %1596 = vmatprep.subr.mxu0 0.0
  %1597 = vmatpush1.msra.mxu0 0.0
  %1598 = vmatprep.subr.mxu0 0.0
  %1599 = vmatpush1.msra.mxu0 0.0
  %1600 = vmatprep.mubr.f32.mxu0 0.0
  %1601 = vmatmul.mubr.f32.gmra.mrb[0].mxu0 %v1534
  %v1602 = vpop.f32.mrb[0].mxu0
  %v1603 = vadd.f32 0.0, %v1602
  %v1604 = vpop.f32.mrb[0].mxu0
  %1605 = vdwg.mxu0
  %v1606 = vadd.f32 %v449, %v1603
  %v1607 = vtanh.pop %v1606
  %v1608 = vmul.f32 %v1607, 0.5
  %v1609 = vadd.f32 %v1608, 0.5
  %v1610 = vmul.f32 %v1609, %v1524
  %1612 = vrot.lane.b32.xlu0 %v1607, 32
  %v1613 = vpop.permute.xlu0 %1612
  %v1615 = vmul.f32 %v1609, %v1613
  %1617 = vrot.lane.b32.xlu0 %v1615, 32
  %v1618 = vpop.permute.xlu0 %1617
  %v1620 = vadd.f32 %v1610, %v1618
  %v1621 = vtanh.pop %v1620
  %1623 = vrot.lane.b32.xlu0 %v1621, 32
  %v1624 = vpop.permute.xlu0 %1623
  %v1626 = vmul.f32 %v1609, %v1624
  %1628 = vrot.lane.b32.xlu0 %v1626, 64
  %v1629 = vpop.permute.xlu0 %1628
  %v1630 = vsel %vm476, %v1629, 0
  %1632 = vmatprep.subr.mxu0 0.0
  %1633 = vmatpush1.msra.mxu0 %v472
  %1634 = vmatprep.subr.mxu0 0.0
  %1635 = vmatpush1.msra.mxu0 %v473
  %1636 = vmatprep.subr.mxu0 0.0
  %1637 = vmatpush1.msra.mxu0 %v474
  %1638 = vmatprep.subr.mxu0 0.0
  %1639 = vmatpush1.msra.mxu0 %v475
  %1640 = vmatprep.subr.mxu0 0.0
  %1641 = vmatpush1.msra.mxu0 0.0
  %1642 = vmatprep.subr.mxu0 0.0
  %1643 = vmatpush1.msra.mxu0 0.0
  %1644 = vmatprep.subr.mxu0 0.0
  %1645 = vmatpush1.msra.mxu0 0.0
  %1646 = vmatprep.subr.mxu0 0.0
  %1647 = vmatpush1.msra.mxu0 0.0
  %1648 = vmatprep.subr.mxu0 0.0
  %1649 = vmatpush1.msra.mxu0 0.0
  %1650 = vmatprep.subr.mxu0 0.0
  %1651 = vmatpush1.msra.mxu0 0.0
  %1652 = vmatprep.subr.mxu0 0.0
  %1653 = vmatpush1.msra.mxu0 0.0
  %1654 = vmatprep.subr.mxu0 0.0
  %1655 = vmatpush1.msra.mxu0 0.0
  %1656 = vmatprep.subr.mxu0 0.0
  %1657 = vmatpush1.msra.mxu0 0.0
  %1658 = vmatprep.subr.mxu0 0.0
  %1659 = vmatpush1.msra.mxu0 0.0
  %1660 = vmatprep.subr.mxu0 0.0
  %1661 = vmatpush1.msra.mxu0 0.0
  %1662 = vmatprep.subr.mxu0 0.0
  %1663 = vmatpush1.msra.mxu0 0.0
  %1664 = vmatprep.subr.mxu0 0.0
  %1665 = vmatpush1.msra.mxu0 0.0
  %1666 = vmatprep.subr.mxu0 0.0
  %1667 = vmatpush1.msra.mxu0 0.0
  %1668 = vmatprep.subr.mxu0 0.0
  %1669 = vmatpush1.msra.mxu0 0.0
  %1670 = vmatprep.subr.mxu0 0.0
  %1671 = vmatpush1.msra.mxu0 0.0
  %1672 = vmatprep.subr.mxu0 0.0
  %1673 = vmatpush1.msra.mxu0 0.0
  %1674 = vmatprep.subr.mxu0 0.0
  %1675 = vmatpush1.msra.mxu0 0.0
  %1676 = vmatprep.subr.mxu0 0.0
  %1677 = vmatpush1.msra.mxu0 0.0
  %1678 = vmatprep.subr.mxu0 0.0
  %1679 = vmatpush1.msra.mxu0 0.0
  %1680 = vmatprep.subr.mxu0 0.0
  %1681 = vmatpush1.msra.mxu0 0.0
  %1682 = vmatprep.subr.mxu0 0.0
  %1683 = vmatpush1.msra.mxu0 0.0
  %1684 = vmatprep.subr.mxu0 0.0
  %1685 = vmatpush1.msra.mxu0 0.0
  %1686 = vmatprep.subr.mxu0 0.0
  %1687 = vmatpush1.msra.mxu0 0.0
  %1688 = vmatprep.subr.mxu0 0.0
  %1689 = vmatpush1.msra.mxu0 0.0
  %1690 = vmatprep.subr.mxu0 0.0
  %1691 = vmatpush1.msra.mxu0 0.0
  %1692 = vmatprep.subr.mxu0 0.0
  %1693 = vmatpush1.msra.mxu0 0.0
  %1694 = vmatprep.subr.mxu0 0.0
  %1695 = vmatpush1.msra.mxu0 0.0
  %1696 = vmatprep.mubr.f32.mxu0 0.0
  %1697 = vmatmul.mubr.f32.gmra.mrb[0].mxu0 %v1630
  %v1698 = vpop.f32.mrb[0].mxu0
  %v1699 = vadd.f32 0.0, %v1698
  %v1700 = vpop.f32.mrb[0].mxu0
  %1701 = vdwg.mxu0
  %v1702 = vadd.f32 %v454, %v1699
  %v1703 = vtanh.pop %v1702
  %v1704 = vmul.f32 %v1703, 0.5
  %v1705 = vadd.f32 %v1704, 0.5
  %v1706 = vmul.f32 %v1705, %v1620
  %1708 = vrot.lane.b32.xlu0 %v1703, 32
  %v1709 = vpop.permute.xlu0 %1708
  %v1711 = vmul.f32 %v1705, %v1709
  %1713 = vrot.lane.b32.xlu0 %v1711, 32
  %v1714 = vpop.permute.xlu0 %1713
  %v1716 = vadd.f32 %v1706, %v1714
  %v1717 = vtanh.pop %v1716
  %1719 = vrot.lane.b32.xlu0 %v1717, 32
  %v1720 = vpop.permute.xlu0 %1719
  %v1722 = vmul.f32 %v1705, %v1720
  %1724 = vrot.lane.b32.xlu0 %v1722, 64
  %v1725 = vpop.permute.xlu0 %1724
  %v1726 = vsel %vm476, %v1725, 0
  %1728 = vmatprep.subr.mxu0 0.0
  %1729 = vmatpush1.msra.mxu0 %v472
  %1730 = vmatprep.subr.mxu0 0.0
  %1731 = vmatpush1.msra.mxu0 %v473
  %1732 = vmatprep.subr.mxu0 0.0
  %1733 = vmatpush1.msra.mxu0 %v474
  %1734 = vmatprep.subr.mxu0 0.0
  %1735 = vmatpush1.msra.mxu0 %v475
  %1736 = vmatprep.subr.mxu0 0.0
  %1737 = vmatpush1.msra.mxu0 0.0
  %1738 = vmatprep.subr.mxu0 0.0
  %1739 = vmatpush1.msra.mxu0 0.0
  %1740 = vmatprep.subr.mxu0 0.0
  %1741 = vmatpush1.msra.mxu0 0.0
  %1742 = vmatprep.subr.mxu0 0.0
  %1743 = vmatpush1.msra.mxu0 0.0
  %1744 = vmatprep.subr.mxu0 0.0
  %1745 = vmatpush1.msra.mxu0 0.0
  %1746 = vmatprep.subr.mxu0 0.0
  %1747 = vmatpush1.msra.mxu0 0.0
  %1748 = vmatprep.subr.mxu0 0.0
  %1749 = vmatpush1.msra.mxu0 0.0
  %1750 = vmatprep.subr.mxu0 0.0
  %1751 = vmatpush1.msra.mxu0 0.0
  %1752 = vmatprep.subr.mxu0 0.0
  %1753 = vmatpush1.msra.mxu0 0.0
  %1754 = vmatprep.subr.mxu0 0.0
  %1755 = vmatpush1.msra.mxu0 0.0
  %1756 = vmatprep.subr.mxu0 0.0
  %1757 = vmatpush1.msra.mxu0 0.0
  %1758 = vmatprep.subr.mxu0 0.0
  %1759 = vmatpush1.msra.mxu0 0.0
  %1760 = vmatprep.subr.mxu0 0.0
  %1761 = vmatpush1.msra.mxu0 0.0
  %1762 = vmatprep.subr.mxu0 0.0
  %1763 = vmatpush1.msra.mxu0 0.0
  %1764 = vmatprep.subr.mxu0 0.0
  %1765 = vmatpush1.msra.mxu0 0.0
  %1766 = vmatprep.subr.mxu0 0.0
  %1767 = vmatpush1.msra.mxu0 0.0
  %1768 = vmatprep.subr.mxu0 0.0
  %1769 = vmatpush1.msra.mxu0 0.0
  %1770 = vmatprep.subr.mxu0 0.0
  %1771 = vmatpush1.msra.mxu0 0.0
  %1772 = vmatprep.subr.mxu0 0.0
  %1773 = vmatpush1.msra.mxu0 0.0
  %1774 = vmatprep.subr.mxu0 0.0
  %1775 = vmatpush1.msra.mxu0 0.0
  %1776 = vmatprep.subr.mxu0 0.0
  %1777 = vmatpush1.msra.mxu0 0.0
  %1778 = vmatprep.subr.mxu0 0.0
  %1779 = vmatpush1.msra.mxu0 0.0
  %1780 = vmatprep.subr.mxu0 0.0
  %1781 = vmatpush1.msra.mxu0 0.0
  %1782 = vmatprep.subr.mxu0 0.0
  %1783 = vmatpush1.msra.mxu0 0.0
  %1784 = vmatprep.subr.mxu0 0.0
  %1785 = vmatpush1.msra.mxu0 0.0
  %1786 = vmatprep.subr.mxu0 0.0
  %1787 = vmatpush1.msra.mxu0 0.0
  %1788 = vmatprep.subr.mxu0 0.0
  %1789 = vmatpush1.msra.mxu0 0.0
  %1790 = vmatprep.subr.mxu0 0.0
  %1791 = vmatpush1.msra.mxu0 0.0
  %1792 = vmatprep.mubr.f32.mxu0 0.0
  %1793 = vmatmul.mubr.f32.gmra.mrb[0].mxu0 %v1726
  %v1794 = vpop.f32.mrb[0].mxu0
  %v1795 = vadd.f32 0.0, %v1794
  %v1796 = vpop.f32.mrb[0].mxu0
  %1797 = vdwg.mxu0
  %v1798 = vadd.f32 %v459, %v1795
  %v1799 = vtanh.pop %v1798
  %v1800 = vmul.f32 %v1799, 0.5
  %v1801 = vadd.f32 %v1800, 0.5
  %v1802 = vmul.f32 %v1801, %v1716
  %1804 = vrot.lane.b32.xlu0 %v1799, 32
  %v1805 = vpop.permute.xlu0 %1804
  %v1807 = vmul.f32 %v1801, %v1805
  %1809 = vrot.lane.b32.xlu0 %v1807, 32
  %v1810 = vpop.permute.xlu0 %1809
  %v1812 = vadd.f32 %v1802, %v1810
  %v1813 = vtanh.pop %v1812
  %1815 = vrot.lane.b32.xlu0 %v1813, 32
  %v1816 = vpop.permute.xlu0 %1815
  %v1818 = vmul.f32 %v1801, %v1816
  %1820 = vrot.lane.b32.xlu0 %v1818, 64
  %v1821 = vpop.permute.xlu0 %1820
  %v1822 = vsel %vm476, %v1821, 0
  %1824 = vmatprep.subr.mxu0 0.0
  %1825 = vmatpush1.msra.mxu0 %v472
  %1826 = vmatprep.subr.mxu0 0.0
  %1827 = vmatpush1.msra.mxu0 %v473
  %1828 = vmatprep.subr.mxu0 0.0
  %1829 = vmatpush1.msra.mxu0 %v474
  %1830 = vmatprep.subr.mxu0 0.0
  %1831 = vmatpush1.msra.mxu0 %v475
  %1832 = vmatprep.subr.mxu0 0.0
  %1833 = vmatpush1.msra.mxu0 0.0
  %1834 = vmatprep.subr.mxu0 0.0
  %1835 = vmatpush1.msra.mxu0 0.0
  %1836 = vmatprep.subr.mxu0 0.0
  %1837 = vmatpush1.msra.mxu0 0.0
  %1838 = vmatprep.subr.mxu0 0.0
  %1839 = vmatpush1.msra.mxu0 0.0
  %1840 = vmatprep.subr.mxu0 0.0
  %1841 = vmatpush1.msra.mxu0 0.0
  %1842 = vmatprep.subr.mxu0 0.0
  %1843 = vmatpush1.msra.mxu0 0.0
  %1844 = vmatprep.subr.mxu0 0.0
  %1845 = vmatpush1.msra.mxu0 0.0
  %1846 = vmatprep.subr.mxu0 0.0
  %1847 = vmatpush1.msra.mxu0 0.0
  %1848 = vmatprep.subr.mxu0 0.0
  %1849 = vmatpush1.msra.mxu0 0.0
  %1850 = vmatprep.subr.mxu0 0.0
  %1851 = vmatpush1.msra.mxu0 0.0
  %1852 = vmatprep.subr.mxu0 0.0
  %1853 = vmatpush1.msra.mxu0 0.0
  %1854 = vmatprep.subr.mxu0 0.0
  %1855 = vmatpush1.msra.mxu0 0.0
  %1856 = vmatprep.subr.mxu0 0.0
  %1857 = vmatpush1.msra.mxu0 0.0
  %1858 = vmatprep.subr.mxu0 0.0
  %1859 = vmatpush1.msra.mxu0 0.0
  %1860 = vmatprep.subr.mxu0 0.0
  %1861 = vmatpush1.msra.mxu0 0.0
  %1862 = vmatprep.subr.mxu0 0.0
  %1863 = vmatpush1.msra.mxu0 0.0
  %1864 = vmatprep.subr.mxu0 0.0
  %1865 = vmatpush1.msra.mxu0 0.0
  %1866 = vmatprep.subr.mxu0 0.0
  %1867 = vmatpush1.msra.mxu0 0.0
  %1868 = vmatprep.subr.mxu0 0.0
  %1869 = vmatpush1.msra.mxu0 0.0
  %1870 = vmatprep.subr.mxu0 0.0
  %1871 = vmatpush1.msra.mxu0 0.0
  %1872 = vmatprep.subr.mxu0 0.0
  %1873 = vmatpush1.msra.mxu0 0.0
  %1874 = vmatprep.subr.mxu0 0.0
  %1875 = vmatpush1.msra.mxu0 0.0
  %1876 = vmatprep.subr.mxu0 0.0
  %1877 = vmatpush1.msra.mxu0 0.0
  %1878 = vmatprep.subr.mxu0 0.0
  %1879 = vmatpush1.msra.mxu0 0.0
  %1880 = vmatprep.subr.mxu0 0.0
  %1881 = vmatpush1.msra.mxu0 0.0
  %1882 = vmatprep.subr.mxu0 0.0
  %1883 = vmatpush1.msra.mxu0 0.0
  %1884 = vmatprep.subr.mxu0 0.0
  %1885 = vmatpush1.msra.mxu0 0.0
  %1886 = vmatprep.subr.mxu0 0.0
  %1887 = vmatpush1.msra.mxu0 0.0
  %1888 = vmatprep.mubr.f32.mxu0 0.0
  %1889 = vmatmul.mubr.f32.gmra.mrb[0].mxu0 %v1822
  %v1890 = vpop.f32.mrb[0].mxu0
  %v1891 = vadd.f32 0.0, %v1890
  %v1892 = vpop.f32.mrb[0].mxu0
  %1893 = vdwg.mxu0
  %v1894 = vadd.f32 %v464, %v1891
  %v1895 = vtanh.pop %v1894
  %v1896 = vmul.f32 %v1895, 0.5
  %v1897 = vadd.f32 %v1896, 0.5
  %v1898 = vmul.f32 %v1897, %v1812
  %1900 = vrot.lane.b32.xlu0 %v1895, 32
  %v1901 = vpop.permute.xlu0 %1900
  %v1903 = vmul.f32 %v1897, %v1901
  %1905 = vrot.lane.b32.xlu0 %v1903, 32
  %v1906 = vpop.permute.xlu0 %1905
  %v1908 = vadd.f32 %v1898, %v1906
  %v1909 = vtanh.pop %v1908
  %1911 = vrot.lane.b32.xlu0 %v1909, 32
  %v1912 = vpop.permute.xlu0 %1911
  %v1914 = vmul.f32 %v1897, %v1912
  %1916 = vrot.lane.b32.xlu0 %v1914, 64
  %v1917 = vpop.permute.xlu0 %1916
  %v1918 = vsel %vm476, %v1917, 0
  %1920 = vmatprep.subr.mxu0 0.0
  %1921 = vmatpush1.msra.mxu0 %v472
  %1922 = vmatprep.subr.mxu0 0.0
  %1923 = vmatpush1.msra.mxu0 %v473
  %1924 = vmatprep.subr.mxu0 0.0
  %1925 = vmatpush1.msra.mxu0 %v474
  %1926 = vmatprep.subr.mxu0 0.0
  %1927 = vmatpush1.msra.mxu0 %v475
  %1928 = vmatprep.subr.mxu0 0.0
  %1929 = vmatpush1.msra.mxu0 0.0
  %1930 = vmatprep.subr.mxu0 0.0
  %1931 = vmatpush1.msra.mxu0 0.0
  %1932 = vmatprep.subr.mxu0 0.0
  %1933 = vmatpush1.msra.mxu0 0.0
  %1934 = vmatprep.subr.mxu0 0.0
  %1935 = vmatpush1.msra.mxu0 0.0
  %1936 = vmatprep.subr.mxu0 0.0
  %1937 = vmatpush1.msra.mxu0 0.0
  %1938 = vmatprep.subr.mxu0 0.0
  %1939 = vmatpush1.msra.mxu0 0.0
  %1940 = vmatprep.subr.mxu0 0.0
  %1941 = vmatpush1.msra.mxu0 0.0
  %1942 = vmatprep.subr.mxu0 0.0
  %1943 = vmatpush1.msra.mxu0 0.0
  %1944 = vmatprep.subr.mxu0 0.0
  %1945 = vmatpush1.msra.mxu0 0.0
  %1946 = vmatprep.subr.mxu0 0.0
  %1947 = vmatpush1.msra.mxu0 0.0
  %1948 = vmatprep.subr.mxu0 0.0
  %1949 = vmatpush1.msra.mxu0 0.0
  %1950 = vmatprep.subr.mxu0 0.0
  %1951 = vmatpush1.msra.mxu0 0.0
  %1952 = vmatprep.subr.mxu0 0.0
  %1953 = vmatpush1.msra.mxu0 0.0
  %1954 = vmatprep.subr.mxu0 0.0
  %1955 = vmatpush1.msra.mxu0 0.0
  %1956 = vmatprep.subr.mxu0 0.0
  %1957 = vmatpush1.msra.mxu0 0.0
  %1958 = vmatprep.subr.mxu0 0.0
  %1959 = vmatpush1.msra.mxu0 0.0
  %1960 = vmatprep.subr.mxu0 0.0
  %1961 = vmatpush1.msra.mxu0 0.0
  %1962 = vmatprep.subr.mxu0 0.0
  %1963 = vmatpush1.msra.mxu0 0.0
  %1964 = vmatprep.subr.mxu0 0.0
  %1965 = vmatpush1.msra.mxu0 0.0
  %1966 = vmatprep.subr.mxu0 0.0
  %1967 = vmatpush1.msra.mxu0 0.0
  %1968 = vmatprep.subr.mxu0 0.0
  %1969 = vmatpush1.msra.mxu0 0.0
  %1970 = vmatprep.subr.mxu0 0.0
  %1971 = vmatpush1.msra.mxu0 0.0
  %1972 = vmatprep.subr.mxu0 0.0
  %1973 = vmatpush1.msra.mxu0 0.0
  %1974 = vmatprep.subr.mxu0 0.0
  %1975 = vmatpush1.msra.mxu0 0.0
  %1976 = vmatprep.subr.mxu0 0.0
  %1977 = vmatpush1.msra.mxu0 0.0
  %1978 = vmatprep.subr.mxu0 0.0
  %1979 = vmatpush1.msra.mxu0 0.0
  %1980 = vmatprep.subr.mxu0 0.0
  %1981 = vmatpush1.msra.mxu0 0.0
  %1982 = vmatprep.subr.mxu0 0.0
  %1983 = vmatpush1.msra.mxu0 0.0
  %1984 = vmatprep.mubr.f32.mxu0 0.0
  %1985 = vmatmul.mubr.f32.gmra.mrb[0].mxu0 %v1918
  %v1986 = vpop.f32.mrb[0].mxu0
  %v1987 = vadd.f32 0.0, %v1986
  %v1988 = vpop.f32.mrb[0].mxu0
  %1989 = vdwg.mxu0
  %v1990 = vadd.f32 %v469, %v1987
  %v1991 = vtanh.pop %v1990
  %v1992 = vmul.f32 %v1991, 0.5
  %v1993 = vadd.f32 %v1992, 0.5
  %v1994 = vmul.f32 %v1993, %v1908
  %1996 = vrot.lane.b32.xlu0 %v1991, 32
  %v1997 = vpop.permute.xlu0 %1996
  %v1999 = vmul.f32 %v1993, %v1997
  %2001 = vrot.lane.b32.xlu0 %v1999, 32
  %v2002 = vpop.permute.xlu0 %2001
  %v2004 = vadd.f32 %v1994, %v2002
  %v2005 = vtanh.pop %v2004
  %2007 = vrot.lane.b32.xlu0 %v2005, 32
  %v2008 = vpop.permute.xlu0 %2007
  %v2010 = vmul.f32 %v1993, %v2008
  %v2011 = vld [vmem:[%s6] sm:$0x1]
  %v2013 = vlaneseq
  %v2014 = vshrl.u32 %v2013, 7
  %v2015 = vsub.s32 0, %v2014
  %v2016 = vrot.slane %v2011, %v2015
  %2017 = vrot.lane.b32.xlu0 %v2016, 64
  %v2018 = vpop.permute.xlu0 %2017
  %v2020 = vmul.f32 %v2010, %v2018
  %2022 = vrot.lane.b32.xlu0 %v2020, 64
  %v2023 = vpop.permute.xlu0 %2022
  %v2025 = vsel %vm476, %v2023, 0.0
  %2026 = vadd.xlane.f32.xlu0 %v2025
  %v2027 = vpop.xlane.xlu0 %2026
  %v2028 = vld [vmem:[#allocation2] sm:$0x1]
  %v2030 = vlaneseq
  %v2031 = vshrl.u32 %v2030, 7
  %v2032 = vsub.s32 0, %v2031
  %v2033 = vrot.slane %v2028, %v2032
  %v2035 = vadd.f32 %v2027, %v2033
  %vm2036 = vcmask 7168
  %2037 = vst.msk [vmem:[%s8] sm:$0xff] %vm2036, %v2035
  // Predicated region
  $region34: #{tpu_custom_call.1} parent=0 // pred_check
    _
  $region35: #{tpu_custom_call.1} parent=0 // pred_check_branch
    %2039 = sbr.rel (0) target = $region37
  $region36: #{tpu_custom_call.1} parent=0 // pred_region
    _
  $region37: #{tpu_custom_call.1} parent=0 // pred_fallthru
    _
  // Predicated region
  $region38: #{tpu_custom_call.1} parent=0 // pred_check
    _
  $region39: #{tpu_custom_call.1} parent=0 // pred_check_branch
    %2041 = sbr.rel (0) target = $region41
  $region40: #{tpu_custom_call.1} parent=0 // pred_region
    _
  $region41: #{tpu_custom_call.1} parent=0 // pred_fallthru
    _

</llo_original>
